<compile_context>
chip_gen: v7x
topology: tpu7x:2x2x1
jax: 0.10.0
libtpu: 0.0.40
codegen_flags: <defaults>
</compile_context>

<pallas_src>
import jax
import jax.numpy as jnp
from jax import lax
from jax.experimental import pallas as pl
from jax.experimental.pallas import tpu as pltpu


def _hybrid_kernel(x_ref,       # (T, Bt, D)   f32   (time-major batch tile)
                   wih_l_ref,   # (D, 4H)      bf16  (= W_ih_lstm.T)
                   whh_l_ref,   # (H, 4H)      bf16  (= W_hh_lstm.T)
                   b_l_ref,     # (1, 4H)      f32   (= b_ih_lstm + b_hh_lstm)
                   wih_r_ref,   # (H, H)       bf16  (= W_ih_rnn.T)
                   whh_r_ref,   # (H, H)       bf16  (= W_hh_rnn.T)
                   b_r_ref,     # (1, H)       f32   (= b_ih_rnn + b_hh_rnn)
                   wfc_ref,     # (H, O)       bf16  (= W_fc.T)
                   bfc_ref,     # (1, O)       f32
                   out_ref,     # (Bt, O)      f32
                   gx_s,        # (T, Bt, 4H)  f32 scratch: hoisted LSTM input proj
                   hs_s,        # (T, Bt, H)   f32 scratch: LSTM hidden sequence
                   pr_s):       # (T, Bt, H)   f32 scratch: hoisted RNN input proj
    T, Bt, D = x_ref.shape
    H = whh_r_ref.shape[0]
    G = 4 * H
    f32 = jnp.float32
    bf16 = jnp.bfloat16

    # ---- Pass 0: hoisted LSTM input projection (one large MXU matmul) ----------------
    # (T, Bt, D) -> (T*Bt, D) is tile-aligned (Bt % 8 == 0), so the reshape is free.
    x_all = x_ref[...].reshape(T * Bt, D).astype(bf16)
    gx = jnp.dot(x_all, wih_l_ref[...], preferred_element_type=f32)
    gx_s[...] = (gx + b_l_ref[...]).reshape(T, Bt, G)

    whh_l = whh_l_ref[...]                                   # stays resident across steps

    # Full-width gate-activation constants (hoisted):  tanh(z) = 2*sigmoid(2z) - 1
    # applied only on the g-gate columns [2H, 3H).
    col = lax.broadcasted_iota(jnp.int32, (Bt, G), 1)
    is_g = jnp.logical_and(col >= 2 * H, col < 3 * H)
    act_scale = jnp.where(is_g, 2.0, 1.0).astype(f32)
    act_shift = jnp.where(is_g, -1.0, 0.0).astype(f32)

    unroll = True if T <= 32 else 4

    # ---- Pass 1: LSTM recurrence (one (Bt,H)@(H,4H) matmul on the serial path) --------
    def lstm_step(t, carry):
        h, c = carry                                          # f32 (Bt, H)
        z = gx_s[t] + jnp.dot(h.astype(bf16), whh_l,
                              preferred_element_type=f32)     # (Bt, 4H) f32
        a = jax.nn.sigmoid(z * act_scale) * act_scale + act_shift
        i_g = a[:, 0 * H:1 * H]
        f_g = a[:, 1 * H:2 * H]
        g_g = a[:, 2 * H:3 * H]
        o_g = a[:, 3 * H:4 * H]
        c_new = f_g * c + i_g * g_g
        h_new = o_g * jnp.tanh(c_new)
        hs_s[t] = h_new
        return h_new, c_new

    zeros = jnp.zeros((Bt, H), f32)
    lax.fori_loop(0, T, lstm_step, (zeros, zeros), unroll=unroll)

    # ---- Pass 2: hoisted RNN input projection (one large MXU matmul) ------------------
    h_all = hs_s[...].reshape(T * Bt, H).astype(bf16)
    pr = jnp.dot(h_all, wih_r_ref[...], preferred_element_type=f32)
    pr_s[...] = (pr + b_r_ref[...]).reshape(T, Bt, H)

    whh_r = whh_r_ref[...]

    # ---- Pass 3: Elman RNN (tanh) recurrence -------------------------------------------
    def rnn_step(t, hr):
        return jnp.tanh(pr_s[t] + jnp.dot(hr.astype(bf16), whh_r,
                                          preferred_element_type=f32))

    hr_last = lax.fori_loop(0, T, rnn_step, zeros, unroll=unroll)

    # ---- Head: Linear + Sigmoid on the last RNN state ----------------------------------
    logits = jnp.dot(hr_last.astype(bf16), wfc_ref[...],
                     preferred_element_type=f32) + bfc_ref[...]
    out_ref[...] = jax.nn.sigmoid(logits)


def lstm_rnn_hybrid(x, params, *, batch_tile=None):
    """x: (B, T, D) float32 (batch_first, like the PyTorch module). Returns (B, O) f32."""
    B, T, D = x.shape
    H = params["whh_rnn"].shape[0]
    O = params["w_fc"].shape[0]
    f32, bf16 = jnp.float32, jnp.bfloat16

    # Pad batch to a multiple of 8 (f32 sublane tile): every per-step matmul LHS gets a
    # full sublane and all in-kernel reshapes stay tile-aligned.
    B_pad = max(8, ((B + 7) // 8) * 8)

    if batch_tile is None:
        batch_tile = B_pad
        for cand in (64, 32, 16, 8):
            if B_pad > cand and B_pad % cand == 0:
                batch_tile = cand                    # >1 tiles -> megacore sharding on v7x
                break
    assert batch_tile % 8 == 0 and B_pad % batch_tile == 0
    n_tiles = B_pad // batch_tile

    # Time-major (T, B_pad, D).  One cheap XLA pass over x; keeps the kernel free of any
    # sublane<->major transposes / relayouts.
    x_tm = jnp.transpose(x.astype(f32), (1, 0, 2))
    if B_pad != B:
        x_tm = jnp.pad(x_tm, ((0, 0), (0, B_pad - B), (0, 0)))

    args = (
        x_tm,                                                        # (T, B_pad, D) f32
        params["wih_lstm"].T.astype(bf16),                           # (D, 4H)
        params["whh_lstm"].T.astype(bf16),                           # (H, 4H)
        (params["bih_lstm"] + params["bhh_lstm"]).reshape(1, 4 * H).astype(f32),
        params["wih_rnn"].T.astype(bf16),                            # (H, H)
        params["whh_rnn"].T.astype(bf16),                            # (H, H)
        (params["bih_rnn"] + params["bhh_rnn"]).reshape(1, H).astype(f32),
        params["w_fc"].T.astype(bf16),                               # (H, O)
        params["b_fc"].reshape(1, O).astype(f32),                    # (1, O)
    )

    def full(shape):
        return pl.BlockSpec(shape, lambda i, _n=len(shape): (0,) * _n)

    in_specs = [
        pl.BlockSpec((T, batch_tile, D), lambda i: (0, i, 0)),       # batch-tiled x
        full((D, 4 * H)),
        full((H, 4 * H)),
        full((1, 4 * H)),
        full((H, H)),
        full((H, H)),
        full((1, H)),
        full((H, O)),
        full((1, O)),
    ]
    out_spec = pl.BlockSpec((batch_tile, O), lambda i: (i, 0))

    out_padded = pl.pallas_call(
        _hybrid_kernel,
        out_shape=jax.ShapeDtypeStruct((B_pad, O), f32),
        grid=(n_tiles,),
        in_specs=in_specs,
        out_specs=out_spec,
        scratch_shapes=[
            pltpu.VMEM((T, batch_tile, 4 * H), f32),   # gx_s
            pltpu.VMEM((T, batch_tile, H), f32),       # hs_s
            pltpu.VMEM((T, batch_tile, H), f32),       # pr_s
        ],
        compiler_params=pltpu.CompilerParams(
            dimension_semantics=("parallel",),
            vmem_limit_bytes=32 * 1024 * 1024,
        ),
    )(*args)
    return out_padded[:B]


def init_params(key, input_size, hidden_size, output_size):
    """Deterministic init matching the PyTorch module's parameter shapes."""
    H, D, O = hidden_size, input_size, output_size
    ks = jax.random.split(key, 10)
    s = 1.0 / jnp.sqrt(H)

    def u(k, shape, scale):
        return jax.random.uniform(k, shape, jnp.float32, -scale, scale)

    return {
        "wih_lstm": u(ks[0], (4 * H, D), s),
        "whh_lstm": u(ks[1], (4 * H, H), s),
        "bih_lstm": u(ks[2], (4 * H,), s),
        "bhh_lstm": u(ks[3], (4 * H,), s),
        "wih_rnn": u(ks[4], (H, H), s),
        "whh_rnn": u(ks[5], (H, H), s),
        "bih_rnn": u(ks[6], (H,), s),
        "bhh_rnn": u(ks[7], (H,), s),
        "w_fc": u(ks[8], (O, H), s),
        "b_fc": u(ks[9], (O,), s),
    }


def reference_forward(x, p, emulate_bf16_matmuls=False):
    """Pure-JAX reference replicating torch semantics (gate order i,f,g,o).

    With emulate_bf16_matmuls=True the matmul operands are rounded to bf16 (accumulation
    in f32), mirroring the kernel's MXU usage, so it can be compared at tight tolerance.
    """
    B, T, D = x.shape
    H = p["whh_rnn"].shape[0]
    if emulate_bf16_matmuls:
        r = lambda a: a.astype(jnp.bfloat16).astype(jnp.float32)
    else:
        r = lambda a: a

    h = jnp.zeros((B, H), jnp.float32)
    c = jnp.zeros((B, H), jnp.float32)
    hr = jnp.zeros((B, H), jnp.float32)
    for t in range(T):
        xt = x[:, t, :]
        g = (r(xt) @ r(p["wih_lstm"].T) + p["bih_lstm"]
             + r(h) @ r(p["whh_lstm"].T) + p["bhh_lstm"])
        i = jax.nn.sigmoid(g[:, 0 * H:1 * H])
        f = jax.nn.sigmoid(g[:, 1 * H:2 * H])
        gg = jnp.tanh(g[:, 2 * H:3 * H])
        o = jax.nn.sigmoid(g[:, 3 * H:4 * H])
        c = f * c + i * gg
        h = o * jnp.tanh(c)
        hr = jnp.tanh(r(h) @ r(p["wih_rnn"].T) + p["bih_rnn"]
                      + r(hr) @ r(p["whh_rnn"].T) + p["bhh_rnn"])
    return jax.nn.sigmoid(r(hr) @ r(p["w_fc"].T) + p["b_fc"])


if __name__ == "__main__":
    B, T, D, H, O = 2, 8, 16, 32, 1
    key = jax.random.PRNGKey(0)
    kx, kp = jax.random.split(key)
    x = jax.random.normal(kx, (B, T, D), jnp.float32)
    params = init_params(kp, D, H, O)

    out = jax.block_until_ready(lstm_rnn_hybrid(x, params))
    assert out.shape == (B, O)

    # Tight check against a reference that uses the same bf16-operand / f32-accumulate
    # matmul numerics as the kernel (validates the kernel logic itself).
    ref_bf16 = reference_forward(x, params, emulate_bf16_matmuls=True)
    assert jnp.allclose(out, ref_bf16, atol=5e-4, rtol=5e-4), (out, ref_bf16)

    # Looser check against the exact f32 PyTorch-semantics reference (bf16 matmul drift).
    ref_f32 = reference_forward(x, params, emulate_bf16_matmuls=False)
    assert jnp.allclose(out, ref_f32, atol=3e-2, rtol=3e-2), (out, ref_f32)

    print("KERNEL_OK")
</pallas_src>

<mosaic_0001>
module attributes {stable_mosaic.version = 11 : i64} {
  func.func @_hybrid_kernel(%arg0: i32, %arg1: memref<8x8x16xf32, #tpu.memory_space<vmem>>, %arg2: memref<16x128xbf16, #tpu.memory_space<vmem>>, %arg3: memref<32x128xbf16, #tpu.memory_space<vmem>>, %arg4: memref<1x128xf32, #tpu.memory_space<vmem>>, %arg5: memref<32x32xbf16, #tpu.memory_space<vmem>>, %arg6: memref<32x32xbf16, #tpu.memory_space<vmem>>, %arg7: memref<1x32xf32, #tpu.memory_space<vmem>>, %arg8: memref<32x1xbf16, #tpu.memory_space<vmem>>, %arg9: memref<1x1xf32, #tpu.memory_space<vmem>>, %arg10: memref<8x1xf32, #tpu.memory_space<vmem>>, %arg11: memref<8x8x128xf32, #tpu.memory_space<vmem>>, %arg12: memref<8x8x32xf32, #tpu.memory_space<vmem>>, %arg13: memref<8x8x32xf32, #tpu.memory_space<vmem>>) attributes {dimension_semantics = [#tpu.dimension_semantics<parallel>], iteration_bounds = array<i64: 1>, scalar_prefetch = 0 : i64, scratch_operands = 3 : i64, tpu.core_type = #tpu.core_type<tc>, window_params = [{transform_indices = @transform_0, window_bounds = array<i64: 8, 8, 16>}, {pipeline_mode = #tpu.pipeline_mode<synchronous>, transform_indices = @transform_1, window_bounds = array<i64: 16, 128>}, {pipeline_mode = #tpu.pipeline_mode<synchronous>, transform_indices = @transform_2, window_bounds = array<i64: 32, 128>}, {pipeline_mode = #tpu.pipeline_mode<synchronous>, transform_indices = @transform_3, window_bounds = array<i64: 1, 128>}, {pipeline_mode = #tpu.pipeline_mode<synchronous>, transform_indices = @transform_4, window_bounds = array<i64: 32, 32>}, {pipeline_mode = #tpu.pipeline_mode<synchronous>, transform_indices = @transform_5, window_bounds = array<i64: 32, 32>}, {pipeline_mode = #tpu.pipeline_mode<synchronous>, transform_indices = @transform_6, window_bounds = array<i64: 1, 32>}, {pipeline_mode = #tpu.pipeline_mode<synchronous>, transform_indices = @transform_7, window_bounds = array<i64: 32, 1>}, {pipeline_mode = #tpu.pipeline_mode<synchronous>, transform_indices = @transform_8, window_bounds = array<i64: 1, 1>}, {transform_indices = @transform_9, window_bounds = array<i64: 8, 1>}]} {
    %c0 = arith.constant 0 : index
    %c0_0 = arith.constant 0 : index
    %c0_1 = arith.constant 0 : index
    %0 = vector.load %arg1[%c0, %c0_0, %c0_1] : memref<8x8x16xf32, #tpu.memory_space<vmem>>, vector<8x8x16xf32>
    %1 = vector.shape_cast %0 : vector<8x8x16xf32> to vector<64x16xf32>
    %2 = arith.truncf %1 : vector<64x16xf32> to vector<64x16xbf16>
    %c0_2 = arith.constant 0 : index
    %c0_3 = arith.constant 0 : index
    %3 = vector.load %arg2[%c0_2, %c0_3] : memref<16x128xbf16, #tpu.memory_space<vmem>>, vector<16x128xbf16>
    %cst = arith.constant dense<0.000000e+00> : vector<64x128xf32>
    %4 = tpu.matmul %2, %3, %cst {dimension_numbers = #tpu.dot_dimension_numbers<[1], [0], [0], [1], [0, 0, 1, 1], [], []>} : vector<64x16xbf16>, vector<16x128xbf16>, vector<64x128xf32> -> vector<64x128xf32>
    %c0_4 = arith.constant 0 : index
    %c0_5 = arith.constant 0 : index
    %5 = vector.load %arg4[%c0_4, %c0_5] : memref<1x128xf32, #tpu.memory_space<vmem>>, vector<1x128xf32>
    %6 = vector.broadcast %5 : vector<1x128xf32> to vector<64x128xf32>
    %7 = arith.addf %4, %6 : vector<64x128xf32>
    %8 = vector.shape_cast %7 : vector<64x128xf32> to vector<8x8x128xf32>
    %c0_6 = arith.constant 0 : index
    %c0_7 = arith.constant 0 : index
    %c0_8 = arith.constant 0 : index
    %9 = vector.load %arg11[%c0_6, %c0_7, %c0_8] : memref<8x8x128xf32, #tpu.memory_space<vmem>>, vector<8x8x128xf32>
    tpu.vector_store %arg11[%c0_6, %c0_7, %c0_8], %8 {strides = array<i32>} : memref<8x8x128xf32, #tpu.memory_space<vmem>>, vector<8x8x128xf32>,
    %c0_9 = arith.constant 0 : index
    %c0_10 = arith.constant 0 : index
    %10 = vector.load %arg3[%c0_9, %c0_10] : memref<32x128xbf16, #tpu.memory_space<vmem>>, vector<32x128xbf16>
    %11 = tpu.iota {dimensions = array<i32: 1>} : vector<8x128xi32>
    %c64_i32 = arith.constant 64 : i32
    %12 = vector.broadcast %c64_i32 : i32 to vector<8x128xi32>
    %13 = arith.cmpi sge, %11, %12 : vector<8x128xi32>
    %c96_i32 = arith.constant 96 : i32
    %14 = vector.broadcast %c96_i32 : i32 to vector<8x128xi32>
    %15 = arith.cmpi slt, %11, %14 : vector<8x128xi32>
    %16 = arith.andi %13, %15 : vector<8x128xi1>
    %cst_11 = arith.constant 2.000000e+00 : f32
    %cst_12 = arith.constant 1.000000e+00 : f32
    %17 = vector.broadcast %cst_11 : f32 to vector<8x128xf32>
    %18 = vector.broadcast %cst_12 : f32 to vector<8x128xf32>
    %19 = arith.select %16, %17, %18 : vector<8x128xi1>, vector<8x128xf32>
    %cst_13 = arith.constant -1.000000e+00 : f32
    %cst_14 = arith.constant 0.000000e+00 : f32
    %20 = vector.broadcast %cst_13 : f32 to vector<8x128xf32>
    %21 = vector.broadcast %cst_14 : f32 to vector<8x128xf32>
    %22 = arith.select %16, %20, %21 : vector<8x128xi1>, vector<8x128xf32>
    %cst_15 = arith.constant 0.000000e+00 : f32
    %23 = vector.broadcast %cst_15 : f32 to vector<8x32xf32>
    %c0_i32 = arith.constant 0 : i32
    %24 = arith.index_cast %c0_i32 : i32 to index
    %c0_16 = arith.constant 0 : index
    %c0_17 = arith.constant 0 : index
    %25 = vector.load %arg11[%24, %c0_16, %c0_17] : memref<8x8x128xf32, #tpu.memory_space<vmem>>, vector<1x8x128xf32>
    %26 = vector.shape_cast %25 : vector<1x8x128xf32> to vector<8x128xf32>
    %27 = arith.truncf %23 : vector<8x32xf32> to vector<8x32xbf16>
    %cst_18 = arith.constant dense<0.000000e+00> : vector<8x128xf32>
    %28 = tpu.matmul %27, %10, %cst_18 {dimension_numbers = #tpu.dot_dimension_numbers<[1], [0], [0], [1], [0, 0, 1, 1], [], []>} : vector<8x32xbf16>, vector<32x128xbf16>, vector<8x128xf32> -> vector<8x128xf32>
    %29 = arith.addf %26, %28 : vector<8x128xf32>
    %30 = arith.mulf %29, %19 : vector<8x128xf32>
    %31 = arith.negf %30 : vector<8x128xf32>
    %32 = math.exp %31 : vector<8x128xf32>
    %cst_19 = arith.constant 1.000000e+00 : f32
    %33 = vector.broadcast %cst_19 : f32 to vector<8x128xf32>
    %34 = arith.addf %33, %32 : vector<8x128xf32>
    %35 = arith.divf %33, %34 : vector<8x128xf32>
    %36 = arith.mulf %35, %19 : vector<8x128xf32>
    %37 = arith.addf %36, %22 : vector<8x128xf32>
    %38 = vector.extract_strided_slice %37 {offsets = [0, 0], sizes = [8, 32], strides = [1, 1]} : vector<8x128xf32> to vector<8x32xf32>
    %39 = vector.extract_strided_slice %37 {offsets = [0, 32], sizes = [8, 32], strides = [1, 1]} : vector<8x128xf32> to vector<8x32xf32>
    %40 = vector.extract_strided_slice %37 {offsets = [0, 64], sizes = [8, 32], strides = [1, 1]} : vector<8x128xf32> to vector<8x32xf32>
    %41 = vector.extract_strided_slice %37 {offsets = [0, 96], sizes = [8, 32], strides = [1, 1]} : vector<8x128xf32> to vector<8x32xf32>
    %42 = arith.mulf %39, %23 : vector<8x32xf32>
    %43 = arith.mulf %38, %40 : vector<8x32xf32>
    %44 = arith.addf %42, %43 : vector<8x32xf32>
    %45 = math.tanh %44 : vector<8x32xf32>
    %46 = arith.mulf %41, %45 : vector<8x32xf32>
    %47 = arith.index_cast %c0_i32 : i32 to index
    %c0_20 = arith.constant 0 : index
    %c0_21 = arith.constant 0 : index
    %48 = vector.load %arg12[%47, %c0_20, %c0_21] : memref<8x8x32xf32, #tpu.memory_space<vmem>>, vector<1x8x32xf32>
    %49 = vector.shape_cast %48 : vector<1x8x32xf32> to vector<8x32xf32>
    %50 = vector.shape_cast %46 : vector<8x32xf32> to vector<1x8x32xf32>
    tpu.vector_store %arg12[%47, %c0_20, %c0_21], %50 {strides = array<i32>} : memref<8x8x32xf32, #tpu.memory_space<vmem>>, vector<1x8x32xf32>,
    %c1_i32 = arith.constant 1 : i32
    %51 = arith.index_cast %c1_i32 : i32 to index
    %c0_22 = arith.constant 0 : index
    %c0_23 = arith.constant 0 : index
    %52 = vector.load %arg11[%51, %c0_22, %c0_23] : memref<8x8x128xf32, #tpu.memory_space<vmem>>, vector<1x8x128xf32>
    %53 = vector.shape_cast %52 : vector<1x8x128xf32> to vector<8x128xf32>
    %54 = arith.truncf %46 : vector<8x32xf32> to vector<8x32xbf16>
    %cst_24 = arith.constant dense<0.000000e+00> : vector<8x128xf32>
    %55 = tpu.matmul %54, %10, %cst_24 {dimension_numbers = #tpu.dot_dimension_numbers<[1], [0], [0], [1], [0, 0, 1, 1], [], []>} : vector<8x32xbf16>, vector<32x128xbf16>, vector<8x128xf32> -> vector<8x128xf32>
    %56 = arith.addf %53, %55 : vector<8x128xf32>
    %57 = arith.mulf %56, %19 : vector<8x128xf32>
    %58 = arith.negf %57 : vector<8x128xf32>
    %59 = math.exp %58 : vector<8x128xf32>
    %cst_25 = arith.constant 1.000000e+00 : f32
    %60 = vector.broadcast %cst_25 : f32 to vector<8x128xf32>
    %61 = arith.addf %60, %59 : vector<8x128xf32>
    %62 = arith.divf %60, %61 : vector<8x128xf32>
    %63 = arith.mulf %62, %19 : vector<8x128xf32>
    %64 = arith.addf %63, %22 : vector<8x128xf32>
    %65 = vector.extract_strided_slice %64 {offsets = [0, 0], sizes = [8, 32], strides = [1, 1]} : vector<8x128xf32> to vector<8x32xf32>
    %66 = vector.extract_strided_slice %64 {offsets = [0, 32], sizes = [8, 32], strides = [1, 1]} : vector<8x128xf32> to vector<8x32xf32>
    %67 = vector.extract_strided_slice %64 {offsets = [0, 64], sizes = [8, 32], strides = [1, 1]} : vector<8x128xf32> to vector<8x32xf32>
    %68 = vector.extract_strided_slice %64 {offsets = [0, 96], sizes = [8, 32], strides = [1, 1]} : vector<8x128xf32> to vector<8x32xf32>
    %69 = arith.mulf %66, %44 : vector<8x32xf32>
    %70 = arith.mulf %65, %67 : vector<8x32xf32>
    %71 = arith.addf %69, %70 : vector<8x32xf32>
    %72 = math.tanh %71 : vector<8x32xf32>
    %73 = arith.mulf %68, %72 : vector<8x32xf32>
    %74 = arith.index_cast %c1_i32 : i32 to index
    %c0_26 = arith.constant 0 : index
    %c0_27 = arith.constant 0 : index
    %75 = vector.load %arg12[%74, %c0_26, %c0_27] : memref<8x8x32xf32, #tpu.memory_space<vmem>>, vector<1x8x32xf32>
    %76 = vector.shape_cast %75 : vector<1x8x32xf32> to vector<8x32xf32>
    %77 = vector.shape_cast %73 : vector<8x32xf32> to vector<1x8x32xf32>
    tpu.vector_store %arg12[%74, %c0_26, %c0_27], %77 {strides = array<i32>} : memref<8x8x32xf32, #tpu.memory_space<vmem>>, vector<1x8x32xf32>,
    %c2_i32 = arith.constant 2 : i32
    %78 = arith.index_cast %c2_i32 : i32 to index
    %c0_28 = arith.constant 0 : index
    %c0_29 = arith.constant 0 : index
    %79 = vector.load %arg11[%78, %c0_28, %c0_29] : memref<8x8x128xf32, #tpu.memory_space<vmem>>, vector<1x8x128xf32>
    %80 = vector.shape_cast %79 : vector<1x8x128xf32> to vector<8x128xf32>
    %81 = arith.truncf %73 : vector<8x32xf32> to vector<8x32xbf16>
    %cst_30 = arith.constant dense<0.000000e+00> : vector<8x128xf32>
    %82 = tpu.matmul %81, %10, %cst_30 {dimension_numbers = #tpu.dot_dimension_numbers<[1], [0], [0], [1], [0, 0, 1, 1], [], []>} : vector<8x32xbf16>, vector<32x128xbf16>, vector<8x128xf32> -> vector<8x128xf32>
    %83 = arith.addf %80, %82 : vector<8x128xf32>
    %84 = arith.mulf %83, %19 : vector<8x128xf32>
    %85 = arith.negf %84 : vector<8x128xf32>
    %86 = math.exp %85 : vector<8x128xf32>
    %cst_31 = arith.constant 1.000000e+00 : f32
    %87 = vector.broadcast %cst_31 : f32 to vector<8x128xf32>
    %88 = arith.addf %87, %86 : vector<8x128xf32>
    %89 = arith.divf %87, %88 : vector<8x128xf32>
    %90 = arith.mulf %89, %19 : vector<8x128xf32>
    %91 = arith.addf %90, %22 : vector<8x128xf32>
    %92 = vector.extract_strided_slice %91 {offsets = [0, 0], sizes = [8, 32], strides = [1, 1]} : vector<8x128xf32> to vector<8x32xf32>
    %93 = vector.extract_strided_slice %91 {offsets = [0, 32], sizes = [8, 32], strides = [1, 1]} : vector<8x128xf32> to vector<8x32xf32>
    %94 = vector.extract_strided_slice %91 {offsets = [0, 64], sizes = [8, 32], strides = [1, 1]} : vector<8x128xf32> to vector<8x32xf32>
    %95 = vector.extract_strided_slice %91 {offsets = [0, 96], sizes = [8, 32], strides = [1, 1]} : vector<8x128xf32> to vector<8x32xf32>
    %96 = arith.mulf %93, %71 : vector<8x32xf32>
    %97 = arith.mulf %92, %94 : vector<8x32xf32>
    %98 = arith.addf %96, %97 : vector<8x32xf32>
    %99 = math.tanh %98 : vector<8x32xf32>
    %100 = arith.mulf %95, %99 : vector<8x32xf32>
    %101 = arith.index_cast %c2_i32 : i32 to index
    %c0_32 = arith.constant 0 : index
    %c0_33 = arith.constant 0 : index
    %102 = vector.load %arg12[%101, %c0_32, %c0_33] : memref<8x8x32xf32, #tpu.memory_space<vmem>>, vector<1x8x32xf32>
    %103 = vector.shape_cast %102 : vector<1x8x32xf32> to vector<8x32xf32>
    %104 = vector.shape_cast %100 : vector<8x32xf32> to vector<1x8x32xf32>
    tpu.vector_store %arg12[%101, %c0_32, %c0_33], %104 {strides = array<i32>} : memref<8x8x32xf32, #tpu.memory_space<vmem>>, vector<1x8x32xf32>,
    %c3_i32 = arith.constant 3 : i32
    %105 = arith.index_cast %c3_i32 : i32 to index
    %c0_34 = arith.constant 0 : index
    %c0_35 = arith.constant 0 : index
    %106 = vector.load %arg11[%105, %c0_34, %c0_35] : memref<8x8x128xf32, #tpu.memory_space<vmem>>, vector<1x8x128xf32>
    %107 = vector.shape_cast %106 : vector<1x8x128xf32> to vector<8x128xf32>
    %108 = arith.truncf %100 : vector<8x32xf32> to vector<8x32xbf16>
    %cst_36 = arith.constant dense<0.000000e+00> : vector<8x128xf32>
    %109 = tpu.matmul %108, %10, %cst_36 {dimension_numbers = #tpu.dot_dimension_numbers<[1], [0], [0], [1], [0, 0, 1, 1], [], []>} : vector<8x32xbf16>, vector<32x128xbf16>, vector<8x128xf32> -> vector<8x128xf32>
    %110 = arith.addf %107, %109 : vector<8x128xf32>
    %111 = arith.mulf %110, %19 : vector<8x128xf32>
    %112 = arith.negf %111 : vector<8x128xf32>
    %113 = math.exp %112 : vector<8x128xf32>
    %cst_37 = arith.constant 1.000000e+00 : f32
    %114 = vector.broadcast %cst_37 : f32 to vector<8x128xf32>
    %115 = arith.addf %114, %113 : vector<8x128xf32>
    %116 = arith.divf %114, %115 : vector<8x128xf32>
    %117 = arith.mulf %116, %19 : vector<8x128xf32>
    %118 = arith.addf %117, %22 : vector<8x128xf32>
    %119 = vector.extract_strided_slice %118 {offsets = [0, 0], sizes = [8, 32], strides = [1, 1]} : vector<8x128xf32> to vector<8x32xf32>
    %120 = vector.extract_strided_slice %118 {offsets = [0, 32], sizes = [8, 32], strides = [1, 1]} : vector<8x128xf32> to vector<8x32xf32>
    %121 = vector.extract_strided_slice %118 {offsets = [0, 64], sizes = [8, 32], strides = [1, 1]} : vector<8x128xf32> to vector<8x32xf32>
    %122 = vector.extract_strided_slice %118 {offsets = [0, 96], sizes = [8, 32], strides = [1, 1]} : vector<8x128xf32> to vector<8x32xf32>
    %123 = arith.mulf %120, %98 : vector<8x32xf32>
    %124 = arith.mulf %119, %121 : vector<8x32xf32>
    %125 = arith.addf %123, %124 : vector<8x32xf32>
    %126 = math.tanh %125 : vector<8x32xf32>
    %127 = arith.mulf %122, %126 : vector<8x32xf32>
    %128 = arith.index_cast %c3_i32 : i32 to index
    %c0_38 = arith.constant 0 : index
    %c0_39 = arith.constant 0 : index
    %129 = vector.load %arg12[%128, %c0_38, %c0_39] : memref<8x8x32xf32, #tpu.memory_space<vmem>>, vector<1x8x32xf32>
    %130 = vector.shape_cast %129 : vector<1x8x32xf32> to vector<8x32xf32>
    %131 = vector.shape_cast %127 : vector<8x32xf32> to vector<1x8x32xf32>
    tpu.vector_store %arg12[%128, %c0_38, %c0_39], %131 {strides = array<i32>} : memref<8x8x32xf32, #tpu.memory_space<vmem>>, vector<1x8x32xf32>,
    %c4_i32 = arith.constant 4 : i32
    %132 = arith.index_cast %c4_i32 : i32 to index
    %c0_40 = arith.constant 0 : index
    %c0_41 = arith.constant 0 : index
    %133 = vector.load %arg11[%132, %c0_40, %c0_41] : memref<8x8x128xf32, #tpu.memory_space<vmem>>, vector<1x8x128xf32>
    %134 = vector.shape_cast %133 : vector<1x8x128xf32> to vector<8x128xf32>
    %135 = arith.truncf %127 : vector<8x32xf32> to vector<8x32xbf16>
    %cst_42 = arith.constant dense<0.000000e+00> : vector<8x128xf32>
    %136 = tpu.matmul %135, %10, %cst_42 {dimension_numbers = #tpu.dot_dimension_numbers<[1], [0], [0], [1], [0, 0, 1, 1], [], []>} : vector<8x32xbf16>, vector<32x128xbf16>, vector<8x128xf32> -> vector<8x128xf32>
    %137 = arith.addf %134, %136 : vector<8x128xf32>
    %138 = arith.mulf %137, %19 : vector<8x128xf32>
    %139 = arith.negf %138 : vector<8x128xf32>
    %140 = math.exp %139 : vector<8x128xf32>
    %cst_43 = arith.constant 1.000000e+00 : f32
    %141 = vector.broadcast %cst_43 : f32 to vector<8x128xf32>
    %142 = arith.addf %141, %140 : vector<8x128xf32>
    %143 = arith.divf %141, %142 : vector<8x128xf32>
    %144 = arith.mulf %143, %19 : vector<8x128xf32>
    %145 = arith.addf %144, %22 : vector<8x128xf32>
    %146 = vector.extract_strided_slice %145 {offsets = [0, 0], sizes = [8, 32], strides = [1, 1]} : vector<8x128xf32> to vector<8x32xf32>
    %147 = vector.extract_strided_slice %145 {offsets = [0, 32], sizes = [8, 32], strides = [1, 1]} : vector<8x128xf32> to vector<8x32xf32>
    %148 = vector.extract_strided_slice %145 {offsets = [0, 64], sizes = [8, 32], strides = [1, 1]} : vector<8x128xf32> to vector<8x32xf32>
    %149 = vector.extract_strided_slice %145 {offsets = [0, 96], sizes = [8, 32], strides = [1, 1]} : vector<8x128xf32> to vector<8x32xf32>
    %150 = arith.mulf %147, %125 : vector<8x32xf32>
    %151 = arith.mulf %146, %148 : vector<8x32xf32>
    %152 = arith.addf %150, %151 : vector<8x32xf32>
    %153 = math.tanh %152 : vector<8x32xf32>
    %154 = arith.mulf %149, %153 : vector<8x32xf32>
    %155 = arith.index_cast %c4_i32 : i32 to index
    %c0_44 = arith.constant 0 : index
    %c0_45 = arith.constant 0 : index
    %156 = vector.load %arg12[%155, %c0_44, %c0_45] : memref<8x8x32xf32, #tpu.memory_space<vmem>>, vector<1x8x32xf32>
    %157 = vector.shape_cast %156 : vector<1x8x32xf32> to vector<8x32xf32>
    %158 = vector.shape_cast %154 : vector<8x32xf32> to vector<1x8x32xf32>
    tpu.vector_store %arg12[%155, %c0_44, %c0_45], %158 {strides = array<i32>} : memref<8x8x32xf32, #tpu.memory_space<vmem>>, vector<1x8x32xf32>,
    %c5_i32 = arith.constant 5 : i32
    %159 = arith.index_cast %c5_i32 : i32 to index
    %c0_46 = arith.constant 0 : index
    %c0_47 = arith.constant 0 : index
    %160 = vector.load %arg11[%159, %c0_46, %c0_47] : memref<8x8x128xf32, #tpu.memory_space<vmem>>, vector<1x8x128xf32>
    %161 = vector.shape_cast %160 : vector<1x8x128xf32> to vector<8x128xf32>
    %162 = arith.truncf %154 : vector<8x32xf32> to vector<8x32xbf16>
    %cst_48 = arith.constant dense<0.000000e+00> : vector<8x128xf32>
    %163 = tpu.matmul %162, %10, %cst_48 {dimension_numbers = #tpu.dot_dimension_numbers<[1], [0], [0], [1], [0, 0, 1, 1], [], []>} : vector<8x32xbf16>, vector<32x128xbf16>, vector<8x128xf32> -> vector<8x128xf32>
    %164 = arith.addf %161, %163 : vector<8x128xf32>
    %165 = arith.mulf %164, %19 : vector<8x128xf32>
    %166 = arith.negf %165 : vector<8x128xf32>
    %167 = math.exp %166 : vector<8x128xf32>
    %cst_49 = arith.constant 1.000000e+00 : f32
    %168 = vector.broadcast %cst_49 : f32 to vector<8x128xf32>
    %169 = arith.addf %168, %167 : vector<8x128xf32>
    %170 = arith.divf %168, %169 : vector<8x128xf32>
    %171 = arith.mulf %170, %19 : vector<8x128xf32>
    %172 = arith.addf %171, %22 : vector<8x128xf32>
    %173 = vector.extract_strided_slice %172 {offsets = [0, 0], sizes = [8, 32], strides = [1, 1]} : vector<8x128xf32> to vector<8x32xf32>
    %174 = vector.extract_strided_slice %172 {offsets = [0, 32], sizes = [8, 32], strides = [1, 1]} : vector<8x128xf32> to vector<8x32xf32>
    %175 = vector.extract_strided_slice %172 {offsets = [0, 64], sizes = [8, 32], strides = [1, 1]} : vector<8x128xf32> to vector<8x32xf32>
    %176 = vector.extract_strided_slice %172 {offsets = [0, 96], sizes = [8, 32], strides = [1, 1]} : vector<8x128xf32> to vector<8x32xf32>
    %177 = arith.mulf %174, %152 : vector<8x32xf32>
    %178 = arith.mulf %173, %175 : vector<8x32xf32>
    %179 = arith.addf %177, %178 : vector<8x32xf32>
    %180 = math.tanh %179 : vector<8x32xf32>
    %181 = arith.mulf %176, %180 : vector<8x32xf32>
    %182 = arith.index_cast %c5_i32 : i32 to index
    %c0_50 = arith.constant 0 : index
    %c0_51 = arith.constant 0 : index
    %183 = vector.load %arg12[%182, %c0_50, %c0_51] : memref<8x8x32xf32, #tpu.memory_space<vmem>>, vector<1x8x32xf32>
    %184 = vector.shape_cast %183 : vector<1x8x32xf32> to vector<8x32xf32>
    %185 = vector.shape_cast %181 : vector<8x32xf32> to vector<1x8x32xf32>
    tpu.vector_store %arg12[%182, %c0_50, %c0_51], %185 {strides = array<i32>} : memref<8x8x32xf32, #tpu.memory_space<vmem>>, vector<1x8x32xf32>,
    %c6_i32 = arith.constant 6 : i32
    %186 = arith.index_cast %c6_i32 : i32 to index
    %c0_52 = arith.constant 0 : index
    %c0_53 = arith.constant 0 : index
    %187 = vector.load %arg11[%186, %c0_52, %c0_53] : memref<8x8x128xf32, #tpu.memory_space<vmem>>, vector<1x8x128xf32>
    %188 = vector.shape_cast %187 : vector<1x8x128xf32> to vector<8x128xf32>
    %189 = arith.truncf %181 : vector<8x32xf32> to vector<8x32xbf16>
    %cst_54 = arith.constant dense<0.000000e+00> : vector<8x128xf32>
    %190 = tpu.matmul %189, %10, %cst_54 {dimension_numbers = #tpu.dot_dimension_numbers<[1], [0], [0], [1], [0, 0, 1, 1], [], []>} : vector<8x32xbf16>, vector<32x128xbf16>, vector<8x128xf32> -> vector<8x128xf32>
    %191 = arith.addf %188, %190 : vector<8x128xf32>
    %192 = arith.mulf %191, %19 : vector<8x128xf32>
    %193 = arith.negf %192 : vector<8x128xf32>
    %194 = math.exp %193 : vector<8x128xf32>
    %cst_55 = arith.constant 1.000000e+00 : f32
    %195 = vector.broadcast %cst_55 : f32 to vector<8x128xf32>
    %196 = arith.addf %195, %194 : vector<8x128xf32>
    %197 = arith.divf %195, %196 : vector<8x128xf32>
    %198 = arith.mulf %197, %19 : vector<8x128xf32>
    %199 = arith.addf %198, %22 : vector<8x128xf32>
    %200 = vector.extract_strided_slice %199 {offsets = [0, 0], sizes = [8, 32], strides = [1, 1]} : vector<8x128xf32> to vector<8x32xf32>
    %201 = vector.extract_strided_slice %199 {offsets = [0, 32], sizes = [8, 32], strides = [1, 1]} : vector<8x128xf32> to vector<8x32xf32>
    %202 = vector.extract_strided_slice %199 {offsets = [0, 64], sizes = [8, 32], strides = [1, 1]} : vector<8x128xf32> to vector<8x32xf32>
    %203 = vector.extract_strided_slice %199 {offsets = [0, 96], sizes = [8, 32], strides = [1, 1]} : vector<8x128xf32> to vector<8x32xf32>
    %204 = arith.mulf %201, %179 : vector<8x32xf32>
    %205 = arith.mulf %200, %202 : vector<8x32xf32>
    %206 = arith.addf %204, %205 : vector<8x32xf32>
    %207 = math.tanh %206 : vector<8x32xf32>
    %208 = arith.mulf %203, %207 : vector<8x32xf32>
    %209 = arith.index_cast %c6_i32 : i32 to index
    %c0_56 = arith.constant 0 : index
    %c0_57 = arith.constant 0 : index
    %210 = vector.load %arg12[%209, %c0_56, %c0_57] : memref<8x8x32xf32, #tpu.memory_space<vmem>>, vector<1x8x32xf32>
    %211 = vector.shape_cast %210 : vector<1x8x32xf32> to vector<8x32xf32>
    %212 = vector.shape_cast %208 : vector<8x32xf32> to vector<1x8x32xf32>
    tpu.vector_store %arg12[%209, %c0_56, %c0_57], %212 {strides = array<i32>} : memref<8x8x32xf32, #tpu.memory_space<vmem>>, vector<1x8x32xf32>,
    %c7_i32 = arith.constant 7 : i32
    %213 = arith.index_cast %c7_i32 : i32 to index
    %c0_58 = arith.constant 0 : index
    %c0_59 = arith.constant 0 : index
    %214 = vector.load %arg11[%213, %c0_58, %c0_59] : memref<8x8x128xf32, #tpu.memory_space<vmem>>, vector<1x8x128xf32>
    %215 = vector.shape_cast %214 : vector<1x8x128xf32> to vector<8x128xf32>
    %216 = arith.truncf %208 : vector<8x32xf32> to vector<8x32xbf16>
    %cst_60 = arith.constant dense<0.000000e+00> : vector<8x128xf32>
    %217 = tpu.matmul %216, %10, %cst_60 {dimension_numbers = #tpu.dot_dimension_numbers<[1], [0], [0], [1], [0, 0, 1, 1], [], []>} : vector<8x32xbf16>, vector<32x128xbf16>, vector<8x128xf32> -> vector<8x128xf32>
    %218 = arith.addf %215, %217 : vector<8x128xf32>
    %219 = arith.mulf %218, %19 : vector<8x128xf32>
    %220 = arith.negf %219 : vector<8x128xf32>
    %221 = math.exp %220 : vector<8x128xf32>
    %cst_61 = arith.constant 1.000000e+00 : f32
    %222 = vector.broadcast %cst_61 : f32 to vector<8x128xf32>
    %223 = arith.addf %222, %221 : vector<8x128xf32>
    %224 = arith.divf %222, %223 : vector<8x128xf32>
    %225 = arith.mulf %224, %19 : vector<8x128xf32>
    %226 = arith.addf %225, %22 : vector<8x128xf32>
    %227 = vector.extract_strided_slice %226 {offsets = [0, 0], sizes = [8, 32], strides = [1, 1]} : vector<8x128xf32> to vector<8x32xf32>
    %228 = vector.extract_strided_slice %226 {offsets = [0, 32], sizes = [8, 32], strides = [1, 1]} : vector<8x128xf32> to vector<8x32xf32>
    %229 = vector.extract_strided_slice %226 {offsets = [0, 64], sizes = [8, 32], strides = [1, 1]} : vector<8x128xf32> to vector<8x32xf32>
    %230 = vector.extract_strided_slice %226 {offsets = [0, 96], sizes = [8, 32], strides = [1, 1]} : vector<8x128xf32> to vector<8x32xf32>
    %231 = arith.mulf %228, %206 : vector<8x32xf32>
    %232 = arith.mulf %227, %229 : vector<8x32xf32>
    %233 = arith.addf %231, %232 : vector<8x32xf32>
    %234 = math.tanh %233 : vector<8x32xf32>
    %235 = arith.mulf %230, %234 : vector<8x32xf32>
    %236 = arith.index_cast %c7_i32 : i32 to index
    %c0_62 = arith.constant 0 : index
    %c0_63 = arith.constant 0 : index
    %237 = vector.load %arg12[%236, %c0_62, %c0_63] : memref<8x8x32xf32, #tpu.memory_space<vmem>>, vector<1x8x32xf32>
    %238 = vector.shape_cast %237 : vector<1x8x32xf32> to vector<8x32xf32>
    %239 = vector.shape_cast %235 : vector<8x32xf32> to vector<1x8x32xf32>
    tpu.vector_store %arg12[%236, %c0_62, %c0_63], %239 {strides = array<i32>} : memref<8x8x32xf32, #tpu.memory_space<vmem>>, vector<1x8x32xf32>,
    %c8_i32 = arith.constant 8 : i32
    %c0_64 = arith.constant 0 : index
    %c0_65 = arith.constant 0 : index
    %c0_66 = arith.constant 0 : index
    %240 = vector.load %arg12[%c0_64, %c0_65, %c0_66] : memref<8x8x32xf32, #tpu.memory_space<vmem>>, vector<8x8x32xf32>
    %241 = vector.shape_cast %240 : vector<8x8x32xf32> to vector<64x32xf32>
    %242 = arith.truncf %241 : vector<64x32xf32> to vector<64x32xbf16>
    %c0_67 = arith.constant 0 : index
    %c0_68 = arith.constant 0 : index
    %243 = vector.load %arg5[%c0_67, %c0_68] : memref<32x32xbf16, #tpu.memory_space<vmem>>, vector<32x32xbf16>
    %cst_69 = arith.constant dense<0.000000e+00> : vector<64x32xf32>
    %244 = tpu.matmul %242, %243, %cst_69 {dimension_numbers = #tpu.dot_dimension_numbers<[1], [0], [0], [1], [0, 0, 1, 1], [], []>} : vector<64x32xbf16>, vector<32x32xbf16>, vector<64x32xf32> -> vector<64x32xf32>
    %c0_70 = arith.constant 0 : index
    %c0_71 = arith.constant 0 : index
    %245 = vector.load %arg7[%c0_70, %c0_71] : memref<1x32xf32, #tpu.memory_space<vmem>>, vector<1x32xf32>
    %246 = vector.broadcast %245 : vector<1x32xf32> to vector<64x32xf32>
    %247 = arith.addf %244, %246 : vector<64x32xf32>
    %248 = vector.shape_cast %247 : vector<64x32xf32> to vector<8x8x32xf32>
    %c0_72 = arith.constant 0 : index
    %c0_73 = arith.constant 0 : index
    %c0_74 = arith.constant 0 : index
    %249 = vector.load %arg13[%c0_72, %c0_73, %c0_74] : memref<8x8x32xf32, #tpu.memory_space<vmem>>, vector<8x8x32xf32>
    tpu.vector_store %arg13[%c0_72, %c0_73, %c0_74], %248 {strides = array<i32>} : memref<8x8x32xf32, #tpu.memory_space<vmem>>, vector<8x8x32xf32>,
    %c0_75 = arith.constant 0 : index
    %c0_76 = arith.constant 0 : index
    %250 = vector.load %arg6[%c0_75, %c0_76] : memref<32x32xbf16, #tpu.memory_space<vmem>>, vector<32x32xbf16>
    %c0_i32_77 = arith.constant 0 : i32
    %251 = arith.index_cast %c0_i32_77 : i32 to index
    %c0_78 = arith.constant 0 : index
    %c0_79 = arith.constant 0 : index
    %252 = vector.load %arg13[%251, %c0_78, %c0_79] : memref<8x8x32xf32, #tpu.memory_space<vmem>>, vector<1x8x32xf32>
    %253 = vector.shape_cast %252 : vector<1x8x32xf32> to vector<8x32xf32>
    %254 = arith.truncf %23 : vector<8x32xf32> to vector<8x32xbf16>
    %cst_80 = arith.constant dense<0.000000e+00> : vector<8x32xf32>
    %255 = tpu.matmul %254, %250, %cst_80 {dimension_numbers = #tpu.dot_dimension_numbers<[1], [0], [0], [1], [0, 0, 1, 1], [], []>} : vector<8x32xbf16>, vector<32x32xbf16>, vector<8x32xf32> -> vector<8x32xf32>
    %256 = arith.addf %253, %255 : vector<8x32xf32>
    %257 = math.tanh %256 : vector<8x32xf32>
    %c1_i32_81 = arith.constant 1 : i32
    %258 = arith.index_cast %c1_i32_81 : i32 to index
    %c0_82 = arith.constant 0 : index
    %c0_83 = arith.constant 0 : index
    %259 = vector.load %arg13[%258, %c0_82, %c0_83] : memref<8x8x32xf32, #tpu.memory_space<vmem>>, vector<1x8x32xf32>
    %260 = vector.shape_cast %259 : vector<1x8x32xf32> to vector<8x32xf32>
    %261 = arith.truncf %257 : vector<8x32xf32> to vector<8x32xbf16>
    %cst_84 = arith.constant dense<0.000000e+00> : vector<8x32xf32>
    %262 = tpu.matmul %261, %250, %cst_84 {dimension_numbers = #tpu.dot_dimension_numbers<[1], [0], [0], [1], [0, 0, 1, 1], [], []>} : vector<8x32xbf16>, vector<32x32xbf16>, vector<8x32xf32> -> vector<8x32xf32>
    %263 = arith.addf %260, %262 : vector<8x32xf32>
    %264 = math.tanh %263 : vector<8x32xf32>
    %c2_i32_85 = arith.constant 2 : i32
    %265 = arith.index_cast %c2_i32_85 : i32 to index
    %c0_86 = arith.constant 0 : index
    %c0_87 = arith.constant 0 : index
    %266 = vector.load %arg13[%265, %c0_86, %c0_87] : memref<8x8x32xf32, #tpu.memory_space<vmem>>, vector<1x8x32xf32>
    %267 = vector.shape_cast %266 : vector<1x8x32xf32> to vector<8x32xf32>
    %268 = arith.truncf %264 : vector<8x32xf32> to vector<8x32xbf16>
    %cst_88 = arith.constant dense<0.000000e+00> : vector<8x32xf32>
    %269 = tpu.matmul %268, %250, %cst_88 {dimension_numbers = #tpu.dot_dimension_numbers<[1], [0], [0], [1], [0, 0, 1, 1], [], []>} : vector<8x32xbf16>, vector<32x32xbf16>, vector<8x32xf32> -> vector<8x32xf32>
    %270 = arith.addf %267, %269 : vector<8x32xf32>
    %271 = math.tanh %270 : vector<8x32xf32>
    %c3_i32_89 = arith.constant 3 : i32
    %272 = arith.index_cast %c3_i32_89 : i32 to index
    %c0_90 = arith.constant 0 : index
    %c0_91 = arith.constant 0 : index
    %273 = vector.load %arg13[%272, %c0_90, %c0_91] : memref<8x8x32xf32, #tpu.memory_space<vmem>>, vector<1x8x32xf32>
    %274 = vector.shape_cast %273 : vector<1x8x32xf32> to vector<8x32xf32>
    %275 = arith.truncf %271 : vector<8x32xf32> to vector<8x32xbf16>
    %cst_92 = arith.constant dense<0.000000e+00> : vector<8x32xf32>
    %276 = tpu.matmul %275, %250, %cst_92 {dimension_numbers = #tpu.dot_dimension_numbers<[1], [0], [0], [1], [0, 0, 1, 1], [], []>} : vector<8x32xbf16>, vector<32x32xbf16>, vector<8x32xf32> -> vector<8x32xf32>
    %277 = arith.addf %274, %276 : vector<8x32xf32>
    %278 = math.tanh %277 : vector<8x32xf32>
    %c4_i32_93 = arith.constant 4 : i32
    %279 = arith.index_cast %c4_i32_93 : i32 to index
    %c0_94 = arith.constant 0 : index
    %c0_95 = arith.constant 0 : index
    %280 = vector.load %arg13[%279, %c0_94, %c0_95] : memref<8x8x32xf32, #tpu.memory_space<vmem>>, vector<1x8x32xf32>
    %281 = vector.shape_cast %280 : vector<1x8x32xf32> to vector<8x32xf32>
    %282 = arith.truncf %278 : vector<8x32xf32> to vector<8x32xbf16>
    %cst_96 = arith.constant dense<0.000000e+00> : vector<8x32xf32>
    %283 = tpu.matmul %282, %250, %cst_96 {dimension_numbers = #tpu.dot_dimension_numbers<[1], [0], [0], [1], [0, 0, 1, 1], [], []>} : vector<8x32xbf16>, vector<32x32xbf16>, vector<8x32xf32> -> vector<8x32xf32>
    %284 = arith.addf %281, %283 : vector<8x32xf32>
    %285 = math.tanh %284 : vector<8x32xf32>
    %c5_i32_97 = arith.constant 5 : i32
    %286 = arith.index_cast %c5_i32_97 : i32 to index
    %c0_98 = arith.constant 0 : index
    %c0_99 = arith.constant 0 : index
    %287 = vector.load %arg13[%286, %c0_98, %c0_99] : memref<8x8x32xf32, #tpu.memory_space<vmem>>, vector<1x8x32xf32>
    %288 = vector.shape_cast %287 : vector<1x8x32xf32> to vector<8x32xf32>
    %289 = arith.truncf %285 : vector<8x32xf32> to vector<8x32xbf16>
    %cst_100 = arith.constant dense<0.000000e+00> : vector<8x32xf32>
    %290 = tpu.matmul %289, %250, %cst_100 {dimension_numbers = #tpu.dot_dimension_numbers<[1], [0], [0], [1], [0, 0, 1, 1], [], []>} : vector<8x32xbf16>, vector<32x32xbf16>, vector<8x32xf32> -> vector<8x32xf32>
    %291 = arith.addf %288, %290 : vector<8x32xf32>
    %292 = math.tanh %291 : vector<8x32xf32>
    %c6_i32_101 = arith.constant 6 : i32
    %293 = arith.index_cast %c6_i32_101 : i32 to index
    %c0_102 = arith.constant 0 : index
    %c0_103 = arith.constant 0 : index
    %294 = vector.load %arg13[%293, %c0_102, %c0_103] : memref<8x8x32xf32, #tpu.memory_space<vmem>>, vector<1x8x32xf32>
    %295 = vector.shape_cast %294 : vector<1x8x32xf32> to vector<8x32xf32>
    %296 = arith.truncf %292 : vector<8x32xf32> to vector<8x32xbf16>
    %cst_104 = arith.constant dense<0.000000e+00> : vector<8x32xf32>
    %297 = tpu.matmul %296, %250, %cst_104 {dimension_numbers = #tpu.dot_dimension_numbers<[1], [0], [0], [1], [0, 0, 1, 1], [], []>} : vector<8x32xbf16>, vector<32x32xbf16>, vector<8x32xf32> -> vector<8x32xf32>
    %298 = arith.addf %295, %297 : vector<8x32xf32>
    %299 = math.tanh %298 : vector<8x32xf32>
    %c7_i32_105 = arith.constant 7 : i32
    %300 = arith.index_cast %c7_i32_105 : i32 to index
    %c0_106 = arith.constant 0 : index
    %c0_107 = arith.constant 0 : index
    %301 = vector.load %arg13[%300, %c0_106, %c0_107] : memref<8x8x32xf32, #tpu.memory_space<vmem>>, vector<1x8x32xf32>
    %302 = vector.shape_cast %301 : vector<1x8x32xf32> to vector<8x32xf32>
    %303 = arith.truncf %299 : vector<8x32xf32> to vector<8x32xbf16>
    %cst_108 = arith.constant dense<0.000000e+00> : vector<8x32xf32>
    %304 = tpu.matmul %303, %250, %cst_108 {dimension_numbers = #tpu.dot_dimension_numbers<[1], [0], [0], [1], [0, 0, 1, 1], [], []>} : vector<8x32xbf16>, vector<32x32xbf16>, vector<8x32xf32> -> vector<8x32xf32>
    %305 = arith.addf %302, %304 : vector<8x32xf32>
    %306 = math.tanh %305 : vector<8x32xf32>
    %c8_i32_109 = arith.constant 8 : i32
    %307 = arith.truncf %306 : vector<8x32xf32> to vector<8x32xbf16>
    %c0_110 = arith.constant 0 : index
    %c0_111 = arith.constant 0 : index
    %308 = vector.load %arg8[%c0_110, %c0_111] : memref<32x1xbf16, #tpu.memory_space<vmem>>, vector<32x1xbf16>
    %cst_112 = arith.constant dense<0.000000e+00> : vector<8x1xf32>
    %309 = tpu.matmul %307, %308, %cst_112 {dimension_numbers = #tpu.dot_dimension_numbers<[1], [0], [0], [1], [0, 0, 1, 1], [], []>} : vector<8x32xbf16>, vector<32x1xbf16>, vector<8x1xf32> -> vector<8x1xf32>
    %c0_113 = arith.constant 0 : index
    %c0_114 = arith.constant 0 : index
    %310 = vector.load %arg9[%c0_113, %c0_114] : memref<1x1xf32, #tpu.memory_space<vmem>>, vector<1x1xf32>
    %311 = vector.broadcast %310 : vector<1x1xf32> to vector<8x1xf32>
    %312 = arith.addf %309, %311 : vector<8x1xf32>
    %313 = arith.negf %312 : vector<8x1xf32>
    %314 = math.exp %313 : vector<8x1xf32>
    %cst_115 = arith.constant 1.000000e+00 : f32
    %315 = vector.broadcast %cst_115 : f32 to vector<8x1xf32>
    %316 = arith.addf %315, %314 : vector<8x1xf32>
    %317 = arith.divf %315, %316 : vector<8x1xf32>
    %c0_116 = arith.constant 0 : index
    %c0_117 = arith.constant 0 : index
    %318 = vector.load %arg10[%c0_116, %c0_117] : memref<8x1xf32, #tpu.memory_space<vmem>>, vector<8x1xf32>
    tpu.vector_store %arg10[%c0_116, %c0_117], %317 {strides = array<i32>} : memref<8x1xf32, #tpu.memory_space<vmem>>, vector<8x1xf32>,
    return
  }
  func.func @transform_0(%arg0: i32) -> (i32, i32, i32) {
    %c0_i32 = arith.constant 0 : i32
    %c0_i32_0 = arith.constant 0 : i32
    %c0_i32_1 = arith.constant 0 : i32
    return %c0_i32, %arg0, %c0_i32_0 : i32, i32, i32
  }
  func.func @transform_1(%arg0: i32) -> (i32, i32) {
    %c0_i32 = arith.constant 0 : i32
    %c0_i32_0 = arith.constant 0 : i32
    %c0_i32_1 = arith.constant 0 : i32
    return %c0_i32, %c0_i32_0 : i32, i32
  }
  func.func @transform_2(%arg0: i32) -> (i32, i32) {
    %c0_i32 = arith.constant 0 : i32
    %c0_i32_0 = arith.constant 0 : i32
    %c0_i32_1 = arith.constant 0 : i32
    return %c0_i32, %c0_i32_0 : i32, i32
  }
  func.func @transform_3(%arg0: i32) -> (i32, i32) {
    %c0_i32 = arith.constant 0 : i32
    %c0_i32_0 = arith.constant 0 : i32
    %c0_i32_1 = arith.constant 0 : i32
    return %c0_i32, %c0_i32_0 : i32, i32
  }
  func.func @transform_4(%arg0: i32) -> (i32, i32) {
    %c0_i32 = arith.constant 0 : i32
    %c0_i32_0 = arith.constant 0 : i32
    %c0_i32_1 = arith.constant 0 : i32
    return %c0_i32, %c0_i32_0 : i32, i32
  }
  func.func @transform_5(%arg0: i32) -> (i32, i32) {
    %c0_i32 = arith.constant 0 : i32
    %c0_i32_0 = arith.constant 0 : i32
    %c0_i32_1 = arith.constant 0 : i32
    return %c0_i32, %c0_i32_0 : i32, i32
  }
  func.func @transform_6(%arg0: i32) -> (i32, i32) {
    %c0_i32 = arith.constant 0 : i32
    %c0_i32_0 = arith.constant 0 : i32
    %c0_i32_1 = arith.constant 0 : i32
    return %c0_i32, %c0_i32_0 : i32, i32
  }
  func.func @transform_7(%arg0: i32) -> (i32, i32) {
    %c0_i32 = arith.constant 0 : i32
    %c0_i32_0 = arith.constant 0 : i32
    %c0_i32_1 = arith.constant 0 : i32
    return %c0_i32, %c0_i32_0 : i32, i32
  }
  func.func @transform_8(%arg0: i32) -> (i32, i32) {
    %c0_i32 = arith.constant 0 : i32
    %c0_i32_0 = arith.constant 0 : i32
    %c0_i32_1 = arith.constant 0 : i32
    return %c0_i32, %c0_i32_0 : i32, i32
  }
  func.func @transform_9(%arg0: i32) -> (i32, i32) {
    %c0_i32 = arith.constant 0 : i32
    %c0_i32_0 = arith.constant 0 : i32
    return %arg0, %c0_i32 : i32, i32
  }
}

</mosaic_0001>

<llo_original>
// kernel: tpu_custom_call.1
$region0: #{tpu_custom_call.1}
  #allocation0 [shape = 'u32[]', space=smem, size = 0x4, offset = 0x4, fixed_abs, tag = 'smem constant byte address 0x4 - core index']
  #allocation1 [shape = 'u32[144,128]{1,0:T(1,128)}', space=vmem, size = 0x12000, scoped, tag = 'internal scratch']
  #allocation2 [shape = 'f32[8,8,128]{2,1,0:T(8,128)}', space=vmem, size = 0x8000, scoped, tag = 'scratch operand']
  #allocation3 [shape = 'f32[8,8,32]{2,1,0:T(8,128)}', space=vmem, size = 0x8000, scoped, tag = 'scratch operand']
  #allocation4 [shape = 'f32[8,8,32]{2,1,0:T(8,128)}', space=vmem, size = 0x8000, scoped, tag = 'scratch operand']
  #allocation5 [shape = 'f32[1,1]{1,0:T(1,128)S(1)}', space=vmem, size = 0x200, scoped, tag = 'scoped memory for tpu_custom_call.1']
  %s0 = inlined_call_operand.hbm [shape: f32[8,8,16], index: 0, kind: input, shape index: {}]
  %s1 = inlined_call_operand.hbm [shape: bf16[16,128], index: 1, kind: input, shape index: {}]
  %s2 = inlined_call_operand.vmem [shape: bf16[32,128], index: 2, kind: input, shape index: {}]
  %s3 = inlined_call_operand.hbm [shape: f32[1,128], index: 3, kind: input, shape index: {}]
  %s4 = inlined_call_operand.vmem [shape: bf16[32,32], index: 4, kind: input, shape index: {}]
  %s5 = inlined_call_operand.hbm [shape: bf16[32,32], index: 5, kind: input, shape index: {}]
  %s6 = inlined_call_operand.vmem [shape: f32[1,32], index: 6, kind: input, shape index: {}]
  %s7 = inlined_call_operand.vmem [shape: bf16[32,1], index: 7, kind: input, shape index: {}]
  %s8 = inlined_call_operand.<no memory space> [shape: f32[1,1], index: 8, kind: input, shape index: {}]
  %s9 = inlined_call_operand.vmem [shape: f32[8,1], index: 9, kind: output, shape index: {}]
  %s10 = sld [smem:[#allocation0]]
  $region62: #{tpu_custom_call.1} parent=0
    _
  %s12 = ssub.s32 1, %s10
  %s13 = scalar_select 0, %s12, %s10
  %v14 = vstv %s8
  %15 = vst [vmem:[#allocation5] sm:$0x1] %v14
  $region1: #{tpu_custom_call.1} parent=0
    #allocation6 [shape = 'u8[32768]{0}', space=vmem, size = 0x8000, scoped, tag = 'input window, operand 0, single buffered']
    #allocation7 [shape = 's32[1]{0}', space=sflag, size = 0x4, scoped, tag = 'scoped memory for tpu_custom_call.1']
    #allocation8 [shape = 'u8[4096]{0}', space=vmem, size = 0x1000, scoped, tag = 'input window, operand 1, single buffered']
    #allocation9 [shape = 's32[1]{0}', space=sflag, size = 0x4, scoped, tag = 'scoped memory for tpu_custom_call.1']
    #allocation10 [shape = 'u8[512]{0}', space=vmem, size = 0x400, scoped, tag = 'input window, operand 3, single buffered']
    #allocation11 [shape = 'u8[8192]{0}', space=vmem, size = 0x2000, scoped, tag = 'input window, operand 5, single buffered']
    #allocation12 [shape = 's32[1]{0}', space=sflag, size = 0x4, scoped, tag = 'scoped memory for tpu_custom_call.1']
    %16 = vsyncpa [#allocation7], 0
    %17 = vsyncpa [#allocation9], 0
    %18 = vsyncpa [#allocation12], 0
    // Predicated region
    $region2: #{tpu_custom_call.1} parent=1 // pred_check
      _
    $region3: #{tpu_custom_call.1} parent=1 // pred_check_branch
      %20 = sbr.rel (0) target = $region5
    $region4: #{tpu_custom_call.1} parent=1 // pred_region
      %s22 = ssub.s32 1024, 1024
      %23 = vsyncadd [#allocation7], %s22
      %s24 = sshll.u32 [#allocation6], 4
      %s25 = int_to_ptr.vmem [resolvable:$true] %s24
      %30 = dma.hbm_to_vmem [thread:$0]  %s0, 1024, %s25, [#allocation7], 128, 128, 8
    $region5: #{tpu_custom_call.1} parent=1 // pred_fallthru
      _
    // Predicated region
    $region6: #{tpu_custom_call.1} parent=1 // pred_check
      _
    $region7: #{tpu_custom_call.1} parent=1 // pred_check_branch
      %32 = sbr.rel (0) target = $region9
    $region8: #{tpu_custom_call.1} parent=1 // pred_region
      %s34 = ssub.s32 128, 128
      %35 = vsyncadd [#allocation9], %s34
      %s36 = sshll.u32 [#allocation8], 4
      %s37 = int_to_ptr.vmem [resolvable:$true] %s36
      %42 = dma.hbm_to_vmem [thread:$0]  %s1, 128, %s37, [#allocation9], 64, 64, 4
    $region9: #{tpu_custom_call.1} parent=1 // pred_fallthru
      _
    // Predicated region
    $region10: #{tpu_custom_call.1} parent=1 // pred_check
      _
    $region11: #{tpu_custom_call.1} parent=1 // pred_check_branch
      %44 = sbr.rel (0) target = $region13
    $region12: #{tpu_custom_call.1} parent=1 // pred_region
      _
    $region13: #{tpu_custom_call.1} parent=1 // pred_fallthru
      _
    // Predicated region
    $region14: #{tpu_custom_call.1} parent=1 // pred_check
      _
    $region15: #{tpu_custom_call.1} parent=1 // pred_check_branch
      %46 = sbr.rel (0) target = $region17
    $region16: #{tpu_custom_call.1} parent=1 // pred_region
      %s48 = ssub.s32 16, 16
      %49 = vsyncadd [#allocation9], %s48
      %s51 = sshll.u32 [#allocation10], 4
      %s52 = int_to_ptr.vmem [resolvable:$true] %s51
      %54 = dma.hbm_to_vmem [thread:$0]  %s3, 16, %s52, [#allocation9]
    $region17: #{tpu_custom_call.1} parent=1 // pred_fallthru
      _
    // Predicated region
    $region18: #{tpu_custom_call.1} parent=1 // pred_check
      _
    $region19: #{tpu_custom_call.1} parent=1 // pred_check_branch
      %56 = sbr.rel (0) target = $region21
    $region20: #{tpu_custom_call.1} parent=1 // pred_region
      _
    $region21: #{tpu_custom_call.1} parent=1 // pred_fallthru
      _
    // Predicated region
    $region22: #{tpu_custom_call.1} parent=1 // pred_check
      _
    $region23: #{tpu_custom_call.1} parent=1 // pred_check_branch
      %58 = sbr.rel (0) target = $region25
    $region24: #{tpu_custom_call.1} parent=1 // pred_region
      %s60 = ssub.s32 256, 256
      %61 = vsyncadd [#allocation12], %s60
      %s62 = sshll.u32 [#allocation11], 4
      %s63 = int_to_ptr.vmem [resolvable:$true] %s62
      %68 = dma.hbm_to_vmem [thread:$0]  %s5, 256, %s63, [#allocation12], 64, 64, 4
    $region25: #{tpu_custom_call.1} parent=1 // pred_fallthru
      _
    // Predicated region
    $region26: #{tpu_custom_call.1} parent=1 // pred_check
      _
    $region27: #{tpu_custom_call.1} parent=1 // pred_check_branch
      %70 = sbr.rel (0) target = $region29
    $region28: #{tpu_custom_call.1} parent=1 // pred_region
      _
    $region29: #{tpu_custom_call.1} parent=1 // pred_fallthru
      _
    // Predicated region
    $region30: #{tpu_custom_call.1} parent=1 // pred_check
      _
    $region31: #{tpu_custom_call.1} parent=1 // pred_check_branch
      %72 = sbr.rel (0) target = $region33
    $region32: #{tpu_custom_call.1} parent=1 // pred_region
      _
    $region33: #{tpu_custom_call.1} parent=1 // pred_fallthru
      _
    // Predicated region
    $region34: #{tpu_custom_call.1} parent=1 // pred_check
      _
    $region35: #{tpu_custom_call.1} parent=1 // pred_check_branch
      %74 = sbr.rel (0) target = $region37
    $region36: #{tpu_custom_call.1} parent=1 // pred_region
      _
    $region37: #{tpu_custom_call.1} parent=1 // pred_fallthru
      _
    // Predicated region
    $region38: #{tpu_custom_call.1} parent=1 // pred_check
      _
    $region39: #{tpu_custom_call.1} parent=1 // pred_check_branch
      %76 = sbr.rel (0) target = $region41
    $region40: #{tpu_custom_call.1} parent=1 // pred_region
      %77 = dma.done [#allocation7], 1024
    $region41: #{tpu_custom_call.1} parent=1 // pred_fallthru
      _
    // Predicated region
    $region42: #{tpu_custom_call.1} parent=1 // pred_check
      _
    $region43: #{tpu_custom_call.1} parent=1 // pred_check_branch
      %79 = sbr.rel (0) target = $region45
    $region44: #{tpu_custom_call.1} parent=1 // pred_region
      %80 = dma.done [#allocation9], 128
    $region45: #{tpu_custom_call.1} parent=1 // pred_fallthru
      _
    // Predicated region
    $region46: #{tpu_custom_call.1} parent=1 // pred_check
      _
    $region47: #{tpu_custom_call.1} parent=1 // pred_check_branch
      %82 = sbr.rel (0) target = $region49
    $region48: #{tpu_custom_call.1} parent=1 // pred_region
      %83 = dma.done [#allocation9], 16
    $region49: #{tpu_custom_call.1} parent=1 // pred_fallthru
      _
    // Predicated region
    $region50: #{tpu_custom_call.1} parent=1 // pred_check
      _
    $region51: #{tpu_custom_call.1} parent=1 // pred_check_branch
      %85 = sbr.rel (0) target = $region53
    $region52: #{tpu_custom_call.1} parent=1 // pred_region
      %86 = dma.done [#allocation12], 256
    $region53: #{tpu_custom_call.1} parent=1 // pred_fallthru
      _
    %v88 = vld [vmem:[#allocation6] sm:$0xff]
    %v89 = vld [vmem:[#allocation6 + $0x8] sm:$0xff]
    %v90 = vld [vmem:[#allocation6 + $0x10] sm:$0xff]
    %v91 = vld [vmem:[#allocation6 + $0x18] sm:$0xff]
    %v92 = vld [vmem:[#allocation6 + $0x20] sm:$0xff]
    %v93 = vld [vmem:[#allocation6 + $0x28] sm:$0xff]
    %v94 = vld [vmem:[#allocation6 + $0x30] sm:$0xff]
    %v95 = vld [vmem:[#allocation6 + $0x38] sm:$0xff]
    %v96 = vpack.c.bf16 %v89, %v88
    %v97 = vpack.c.bf16 %v91, %v90
    %v98 = vpack.c.bf16 %v93, %v92
    %v99 = vpack.c.bf16 %v95, %v94
    %v100 = vld [vmem:[#allocation8] sm:$0xf]
    %v101 = vld [vmem:[#allocation8 + $0x4] sm:$0xf]
    %v102 = vld [vmem:[#allocation10] sm:$0x1]
    %v104 = vlaneseq
    %v105 = vshrl.u32 %v104, 7
    %v106 = vsub.s32 0, %v105
    %v107 = vrot.slane %v102, %v106
    %v111 = vunpack.c.l.b16 %v100
    %v112 = vunpack.c.l.b16 %v101
    %v113 = vpack.c.b16 %v112, %v111
    %vm115 = vcmask 130048
    %v117 = vsel %vm115, %v96, 0
    %v120 = vsel %vm115, %v97, 0
    %v123 = vsel %vm115, %v98, 0
    %v126 = vsel %vm115, %v99, 0
    %128 = vmatprep.subr.bf16.mxu0 0
    %129 = vmatpush1.bf16.msra.mxu0 %v113
    %130 = vmatprep.subr.bf16.mxu0 0
    %131 = vmatpush1.bf16.msra.mxu0 0
    %132 = vmatprep.subr.bf16.mxu0 0
    %133 = vmatpush1.bf16.msra.mxu0 0
    %134 = vmatprep.subr.bf16.mxu0 0
    %135 = vmatpush1.bf16.msra.mxu0 0
    %136 = vmatprep.subr.bf16.mxu0 0
    %137 = vmatpush1.bf16.msra.mxu0 0
    %138 = vmatprep.subr.bf16.mxu0 0
    %139 = vmatpush1.bf16.msra.mxu0 0
    %140 = vmatprep.subr.bf16.mxu0 0
    %141 = vmatpush1.bf16.msra.mxu0 0
    %142 = vmatprep.subr.bf16.mxu0 0
    %143 = vmatpush1.bf16.msra.mxu0 0
    %144 = vmatprep.subr.bf16.mxu0 0
    %145 = vmatpush1.bf16.msra.mxu0 0
    %146 = vmatprep.subr.bf16.mxu0 0
    %147 = vmatpush1.bf16.msra.mxu0 0
    %148 = vmatprep.subr.bf16.mxu0 0
    %149 = vmatpush1.bf16.msra.mxu0 0
    %150 = vmatprep.subr.bf16.mxu0 0
    %151 = vmatpush1.bf16.msra.mxu0 0
    %152 = vmatprep.subr.bf16.mxu0 0
    %153 = vmatpush1.bf16.msra.mxu0 0
    %154 = vmatprep.subr.bf16.mxu0 0
    %155 = vmatpush1.bf16.msra.mxu0 0
    %156 = vmatprep.subr.bf16.mxu0 0
    %157 = vmatpush1.bf16.msra.mxu0 0
    %158 = vmatprep.subr.bf16.mxu0 0
    %159 = vmatpush1.bf16.msra.mxu0 0
    %160 = vmatprep.mubr.bf16.mxu0 0
    %161 = vmatmul.mubr.bf16.gmra.mrb[0].mxu0 %v117
    %v162 = vpop.f32.mrb[0].mxu0
    %v163 = vadd.f32 %v107, %v162
    %v164 = vpop.f32.mrb[0].mxu0
    %v165 = vpop.f32.mrb[0].mxu0
    %v166 = vadd.f32 %v107, %v165
    %v167 = vpop.f32.mrb[0].mxu0
    %168 = vmatprep.mubr.bf16.mxu0 0
    %169 = vmatmul.mubr.bf16.gmra.mrb[0].mxu0 %v120
    %v170 = vpop.f32.mrb[0].mxu0
    %v171 = vadd.f32 %v107, %v170
    %v172 = vpop.f32.mrb[0].mxu0
    %v173 = vpop.f32.mrb[0].mxu0
    %v174 = vadd.f32 %v107, %v173
    %v175 = vpop.f32.mrb[0].mxu0
    %176 = vmatprep.mubr.bf16.mxu0 0
    %177 = vmatmul.mubr.bf16.gmra.mrb[0].mxu0 %v123
    %v178 = vpop.f32.mrb[0].mxu0
    %v179 = vadd.f32 %v107, %v178
    %v180 = vpop.f32.mrb[0].mxu0
    %v181 = vpop.f32.mrb[0].mxu0
    %v182 = vadd.f32 %v107, %v181
    %v183 = vpop.f32.mrb[0].mxu0
    %184 = vmatprep.mubr.bf16.mxu0 0
    %185 = vmatmul.mubr.bf16.gmra.mrb[0].mxu0 %v126
    %v186 = vpop.f32.mrb[0].mxu0
    %v187 = vadd.f32 %v107, %v186
    %v188 = vpop.f32.mrb[0].mxu0
    %v189 = vpop.f32.mrb[0].mxu0
    %v190 = vadd.f32 %v107, %v189
    %v191 = vpop.f32.mrb[0].mxu0
    %192 = vdwg.mxu0
    %193 = vst [vmem:[#allocation2] sm:$0xff] %v163
    %194 = vst [vmem:[#allocation2 + $0x8] sm:$0xff] %v166
    %195 = vst [vmem:[#allocation2 + $0x10] sm:$0xff] %v171
    %196 = vst [vmem:[#allocation2 + $0x18] sm:$0xff] %v174
    %197 = vst [vmem:[#allocation2 + $0x20] sm:$0xff] %v179
    %198 = vst [vmem:[#allocation2 + $0x28] sm:$0xff] %v182
    %199 = vst [vmem:[#allocation2 + $0x30] sm:$0xff] %v187
    %200 = vst [vmem:[#allocation2 + $0x38] sm:$0xff] %v190
    %v201 = vld [vmem:[%s2] sm:$0xf]
    %v202 = vld [vmem:[%s2 + $0x4] sm:$0xf]
    %v203 = vld [vmem:[%s2 + $0x8] sm:$0xf]
    %v204 = vld [vmem:[%s2 + $0xc] sm:$0xf]
    %v205 = vlaneseq
    %v206 = vand.u32 %v205, 127
    %vm207 = vcmp.ge.s32.totalorder %v206, 64
    %vm208 = vcmp.lt.s32.totalorder %v206, 96
    %vm209 = vmand %vm207, %vm208
    %v210 = vsel %vm209, 2.0, 1.0
    %v211 = vsel %vm209, -1.0, 0.0
    %v212 = vld [vmem:[#allocation2] sm:$0xff]
    %v217 = vunpack.c.l.b16 %v201
    %v218 = vunpack.c.l.b16 %v202
    %v219 = vunpack.c.l.b16 %v203
    %v220 = vunpack.c.l.b16 %v204
    %v221 = vpack.c.b16 %v218, %v217
    %v222 = vpack.c.b16 %v220, %v219
    %vm225 = vcmask 261120
    %v227 = vsel %vm225, 0, 0
    %229 = vmatprep.subr.bf16.mxu0 0
    %230 = vmatpush1.bf16.msra.mxu0 %v221
    %231 = vmatprep.subr.bf16.mxu0 0
    %232 = vmatpush1.bf16.msra.mxu0 %v222
    %233 = vmatprep.subr.bf16.mxu0 0
    %234 = vmatpush1.bf16.msra.mxu0 0
    %235 = vmatprep.subr.bf16.mxu0 0
    %236 = vmatpush1.bf16.msra.mxu0 0
    %237 = vmatprep.subr.bf16.mxu0 0
    %238 = vmatpush1.bf16.msra.mxu0 0
    %239 = vmatprep.subr.bf16.mxu0 0
    %240 = vmatpush1.bf16.msra.mxu0 0
    %241 = vmatprep.subr.bf16.mxu0 0
    %242 = vmatpush1.bf16.msra.mxu0 0
    %243 = vmatprep.subr.bf16.mxu0 0
    %244 = vmatpush1.bf16.msra.mxu0 0
    %245 = vmatprep.subr.bf16.mxu0 0
    %246 = vmatpush1.bf16.msra.mxu0 0
    %247 = vmatprep.subr.bf16.mxu0 0
    %248 = vmatpush1.bf16.msra.mxu0 0
    %249 = vmatprep.subr.bf16.mxu0 0
    %250 = vmatpush1.bf16.msra.mxu0 0
    %251 = vmatprep.subr.bf16.mxu0 0
    %252 = vmatpush1.bf16.msra.mxu0 0
    %253 = vmatprep.subr.bf16.mxu0 0
    %254 = vmatpush1.bf16.msra.mxu0 0
    %255 = vmatprep.subr.bf16.mxu0 0
    %256 = vmatpush1.bf16.msra.mxu0 0
    %257 = vmatprep.subr.bf16.mxu0 0
    %258 = vmatpush1.bf16.msra.mxu0 0
    %259 = vmatprep.subr.bf16.mxu0 0
    %260 = vmatpush1.bf16.msra.mxu0 0
    %261 = vmatprep.mubr.bf16.mxu0 0
    %262 = vmatmul.mubr.bf16.gmra.mrb[0].mxu0 %v227
    %v263 = vpop.f32.mrb[0].mxu0
    %v264 = vadd.f32 0.0, %v263
    %v265 = vpop.f32.mrb[0].mxu0
    %v266 = vpop.f32.mrb[0].mxu0
    %v267 = vpop.f32.mrb[0].mxu0
    %268 = vdwg.mxu0
    %v269 = vadd.f32 %v212, %v264
    %v270 = vmul.f32 %v269, %v210
    %v271 = vxor.u32 %v270, 2147483648
    %v272 = vmul.f32 %v271, 1.442695
    %v273 = vpow.pop %v272
    %v274 = vadd.f32 %v273, 1.0
    %v275 = vrcp.pop %v274
    %v276 = vmul.f32 1.0, %v275
    %v277 = vmul.f32 %v276, %v210
    %v278 = vadd.f32 %v277, %v211
    %v279 = vmul.f32 %v278, 0.0
    %281 = vrot.lane.b32.xlu0 %v278, 64
    %v282 = vpop.permute.xlu0 %281
    %v284 = vmul.f32 %v278, %v282
    %286 = vrot.lane.b32.xlu0 %v284, 32
    %v287 = vpop.permute.xlu0 %286
    %v289 = vadd.f32 %v279, %v287
    %v290 = vtanh.pop %v289
    %292 = vrot.lane.b32.xlu0 %v290, 64
    %v293 = vpop.permute.xlu0 %292
    %v295 = vmul.f32 %v278, %v293
    %297 = vrot.lane.b32.xlu0 %v295, 32
    %v298 = vpop.permute.xlu0 %297
    %300 = vst.msk [vmem:[#allocation3] sm:$0xff] %vm225, %v298
    %s301 = scalar_lea.vmem [#allocation2], 8
    %v302 = vld [vmem:[%s301] sm:$0xff]
    %v303 = vpack.c.bf16 %v295, %v295
    %305 = vrot.lane.b32.xlu0 %v303, 32
    %v306 = vpop.permute.xlu0 %305
    %v308 = vsel %vm225, %v306, 0
    %310 = vmatprep.subr.bf16.mxu0 0
    %311 = vmatpush1.bf16.msra.mxu0 %v221
    %312 = vmatprep.subr.bf16.mxu0 0
    %313 = vmatpush1.bf16.msra.mxu0 %v222
    %314 = vmatprep.subr.bf16.mxu0 0
    %315 = vmatpush1.bf16.msra.mxu0 0
    %316 = vmatprep.subr.bf16.mxu0 0
    %317 = vmatpush1.bf16.msra.mxu0 0
    %318 = vmatprep.subr.bf16.mxu0 0
    %319 = vmatpush1.bf16.msra.mxu0 0
    %320 = vmatprep.subr.bf16.mxu0 0
    %321 = vmatpush1.bf16.msra.mxu0 0
    %322 = vmatprep.subr.bf16.mxu0 0
    %323 = vmatpush1.bf16.msra.mxu0 0
    %324 = vmatprep.subr.bf16.mxu0 0
    %325 = vmatpush1.bf16.msra.mxu0 0
    %326 = vmatprep.subr.bf16.mxu0 0
    %327 = vmatpush1.bf16.msra.mxu0 0
    %328 = vmatprep.subr.bf16.mxu0 0
    %329 = vmatpush1.bf16.msra.mxu0 0
    %330 = vmatprep.subr.bf16.mxu0 0
    %331 = vmatpush1.bf16.msra.mxu0 0
    %332 = vmatprep.subr.bf16.mxu0 0
    %333 = vmatpush1.bf16.msra.mxu0 0
    %334 = vmatprep.subr.bf16.mxu0 0
    %335 = vmatpush1.bf16.msra.mxu0 0
    %336 = vmatprep.subr.bf16.mxu0 0
    %337 = vmatpush1.bf16.msra.mxu0 0
    %338 = vmatprep.subr.bf16.mxu0 0
    %339 = vmatpush1.bf16.msra.mxu0 0
    %340 = vmatprep.subr.bf16.mxu0 0
    %341 = vmatpush1.bf16.msra.mxu0 0
    %342 = vmatprep.mubr.bf16.mxu0 0
    %343 = vmatmul.mubr.bf16.gmra.mrb[0].mxu0 %v308
    %v344 = vpop.f32.mrb[0].mxu0
    %v345 = vadd.f32 0.0, %v344
    %v346 = vpop.f32.mrb[0].mxu0
    %v347 = vpop.f32.mrb[0].mxu0
    %v348 = vpop.f32.mrb[0].mxu0
    %349 = vdwg.mxu0
    %v350 = vadd.f32 %v302, %v345
    %v351 = vmul.f32 %v350, %v210
    %v352 = vxor.u32 %v351, 2147483648
    %v353 = vmul.f32 %v352, 1.442695
    %v354 = vpow.pop %v353
    %v355 = vadd.f32 %v354, 1.0
    %v356 = vrcp.pop %v355
    %v357 = vmul.f32 1.0, %v356
    %v358 = vmul.f32 %v357, %v210
    %v359 = vadd.f32 %v358, %v211
    %v360 = vmul.f32 %v359, %v289
    %362 = vrot.lane.b32.xlu0 %v359, 64
    %v363 = vpop.permute.xlu0 %362
    %v365 = vmul.f32 %v359, %v363
    %367 = vrot.lane.b32.xlu0 %v365, 32
    %v368 = vpop.permute.xlu0 %367
    %v370 = vadd.f32 %v360, %v368
    %v371 = vtanh.pop %v370
    %373 = vrot.lane.b32.xlu0 %v371, 64
    %v374 = vpop.permute.xlu0 %373
    %v376 = vmul.f32 %v359, %v374
    %378 = vrot.lane.b32.xlu0 %v376, 32
    %v379 = vpop.permute.xlu0 %378
    %s381 = scalar_lea.vmem [#allocation3], 8
    %382 = vst.msk [vmem:[%s381] sm:$0xff] %vm225, %v379
    %s383 = scalar_lea.vmem [#allocation2], 16
    %v384 = vld [vmem:[%s383] sm:$0xff]
    %v385 = vpack.c.bf16 %v376, %v376
    %387 = vrot.lane.b32.xlu0 %v385, 32
    %v388 = vpop.permute.xlu0 %387
    %v390 = vsel %vm225, %v388, 0
    %392 = vmatprep.subr.bf16.mxu0 0
    %393 = vmatpush1.bf16.msra.mxu0 %v221
    %394 = vmatprep.subr.bf16.mxu0 0
    %395 = vmatpush1.bf16.msra.mxu0 %v222
    %396 = vmatprep.subr.bf16.mxu0 0
    %397 = vmatpush1.bf16.msra.mxu0 0
    %398 = vmatprep.subr.bf16.mxu0 0
    %399 = vmatpush1.bf16.msra.mxu0 0
    %400 = vmatprep.subr.bf16.mxu0 0
    %401 = vmatpush1.bf16.msra.mxu0 0
    %402 = vmatprep.subr.bf16.mxu0 0
    %403 = vmatpush1.bf16.msra.mxu0 0
    %404 = vmatprep.subr.bf16.mxu0 0
    %405 = vmatpush1.bf16.msra.mxu0 0
    %406 = vmatprep.subr.bf16.mxu0 0
    %407 = vmatpush1.bf16.msra.mxu0 0
    %408 = vmatprep.subr.bf16.mxu0 0
    %409 = vmatpush1.bf16.msra.mxu0 0
    %410 = vmatprep.subr.bf16.mxu0 0
    %411 = vmatpush1.bf16.msra.mxu0 0
    %412 = vmatprep.subr.bf16.mxu0 0
    %413 = vmatpush1.bf16.msra.mxu0 0
    %414 = vmatprep.subr.bf16.mxu0 0
    %415 = vmatpush1.bf16.msra.mxu0 0
    %416 = vmatprep.subr.bf16.mxu0 0
    %417 = vmatpush1.bf16.msra.mxu0 0
    %418 = vmatprep.subr.bf16.mxu0 0
    %419 = vmatpush1.bf16.msra.mxu0 0
    %420 = vmatprep.subr.bf16.mxu0 0
    %421 = vmatpush1.bf16.msra.mxu0 0
    %422 = vmatprep.subr.bf16.mxu0 0
    %423 = vmatpush1.bf16.msra.mxu0 0
    %424 = vmatprep.mubr.bf16.mxu0 0
    %425 = vmatmul.mubr.bf16.gmra.mrb[0].mxu0 %v390
    %v426 = vpop.f32.mrb[0].mxu0
    %v427 = vadd.f32 0.0, %v426
    %v428 = vpop.f32.mrb[0].mxu0
    %v429 = vpop.f32.mrb[0].mxu0
    %v430 = vpop.f32.mrb[0].mxu0
    %431 = vdwg.mxu0
    %v432 = vadd.f32 %v384, %v427
    %v433 = vmul.f32 %v432, %v210
    %v434 = vxor.u32 %v433, 2147483648
    %v435 = vmul.f32 %v434, 1.442695
    %v436 = vpow.pop %v435
    %v437 = vadd.f32 %v436, 1.0
    %v438 = vrcp.pop %v437
    %v439 = vmul.f32 1.0, %v438
    %v440 = vmul.f32 %v439, %v210
    %v441 = vadd.f32 %v440, %v211
    %v442 = vmul.f32 %v441, %v370
    %444 = vrot.lane.b32.xlu0 %v441, 64
    %v445 = vpop.permute.xlu0 %444
    %v447 = vmul.f32 %v441, %v445
    %449 = vrot.lane.b32.xlu0 %v447, 32
    %v450 = vpop.permute.xlu0 %449
    %v452 = vadd.f32 %v442, %v450
    %v453 = vtanh.pop %v452
    %455 = vrot.lane.b32.xlu0 %v453, 64
    %v456 = vpop.permute.xlu0 %455
    %v458 = vmul.f32 %v441, %v456
    %460 = vrot.lane.b32.xlu0 %v458, 32
    %v461 = vpop.permute.xlu0 %460
    %s463 = scalar_lea.vmem [#allocation3], 16
    %464 = vst.msk [vmem:[%s463] sm:$0xff] %vm225, %v461
    %s465 = scalar_lea.vmem [#allocation2], 24
    %v466 = vld [vmem:[%s465] sm:$0xff]
    %v467 = vpack.c.bf16 %v458, %v458
    %469 = vrot.lane.b32.xlu0 %v467, 32
    %v470 = vpop.permute.xlu0 %469
    %v472 = vsel %vm225, %v470, 0
    %474 = vmatprep.subr.bf16.mxu0 0
    %475 = vmatpush1.bf16.msra.mxu0 %v221
    %476 = vmatprep.subr.bf16.mxu0 0
    %477 = vmatpush1.bf16.msra.mxu0 %v222
    %478 = vmatprep.subr.bf16.mxu0 0
    %479 = vmatpush1.bf16.msra.mxu0 0
    %480 = vmatprep.subr.bf16.mxu0 0
    %481 = vmatpush1.bf16.msra.mxu0 0
    %482 = vmatprep.subr.bf16.mxu0 0
    %483 = vmatpush1.bf16.msra.mxu0 0
    %484 = vmatprep.subr.bf16.mxu0 0
    %485 = vmatpush1.bf16.msra.mxu0 0
    %486 = vmatprep.subr.bf16.mxu0 0
    %487 = vmatpush1.bf16.msra.mxu0 0
    %488 = vmatprep.subr.bf16.mxu0 0
    %489 = vmatpush1.bf16.msra.mxu0 0
    %490 = vmatprep.subr.bf16.mxu0 0
    %491 = vmatpush1.bf16.msra.mxu0 0
    %492 = vmatprep.subr.bf16.mxu0 0
    %493 = vmatpush1.bf16.msra.mxu0 0
    %494 = vmatprep.subr.bf16.mxu0 0
    %495 = vmatpush1.bf16.msra.mxu0 0
    %496 = vmatprep.subr.bf16.mxu0 0
    %497 = vmatpush1.bf16.msra.mxu0 0
    %498 = vmatprep.subr.bf16.mxu0 0
    %499 = vmatpush1.bf16.msra.mxu0 0
    %500 = vmatprep.subr.bf16.mxu0 0
    %501 = vmatpush1.bf16.msra.mxu0 0
    %502 = vmatprep.subr.bf16.mxu0 0
    %503 = vmatpush1.bf16.msra.mxu0 0
    %504 = vmatprep.subr.bf16.mxu0 0
    %505 = vmatpush1.bf16.msra.mxu0 0
    %506 = vmatprep.mubr.bf16.mxu0 0
    %507 = vmatmul.mubr.bf16.gmra.mrb[0].mxu0 %v472
    %v508 = vpop.f32.mrb[0].mxu0
    %v509 = vadd.f32 0.0, %v508
    %v510 = vpop.f32.mrb[0].mxu0
    %v511 = vpop.f32.mrb[0].mxu0
    %v512 = vpop.f32.mrb[0].mxu0
    %513 = vdwg.mxu0
    %v514 = vadd.f32 %v466, %v509
    %v515 = vmul.f32 %v514, %v210
    %v516 = vxor.u32 %v515, 2147483648
    %v517 = vmul.f32 %v516, 1.442695
    %v518 = vpow.pop %v517
    %v519 = vadd.f32 %v518, 1.0
    %v520 = vrcp.pop %v519
    %v521 = vmul.f32 1.0, %v520
    %v522 = vmul.f32 %v521, %v210
    %v523 = vadd.f32 %v522, %v211
    %v524 = vmul.f32 %v523, %v452
    %526 = vrot.lane.b32.xlu0 %v523, 64
    %v527 = vpop.permute.xlu0 %526
    %v529 = vmul.f32 %v523, %v527
    %531 = vrot.lane.b32.xlu0 %v529, 32
    %v532 = vpop.permute.xlu0 %531
    %v534 = vadd.f32 %v524, %v532
    %v535 = vtanh.pop %v534
    %537 = vrot.lane.b32.xlu0 %v535, 64
    %v538 = vpop.permute.xlu0 %537
    %v540 = vmul.f32 %v523, %v538
    %542 = vrot.lane.b32.xlu0 %v540, 32
    %v543 = vpop.permute.xlu0 %542
    %s545 = scalar_lea.vmem [#allocation3], 24
    %546 = vst.msk [vmem:[%s545] sm:$0xff] %vm225, %v543
    %s547 = scalar_lea.vmem [#allocation2], 32
    %v548 = vld [vmem:[%s547] sm:$0xff]
    %v549 = vpack.c.bf16 %v540, %v540
    %551 = vrot.lane.b32.xlu0 %v549, 32
    %v552 = vpop.permute.xlu0 %551
    %v554 = vsel %vm225, %v552, 0
    %556 = vmatprep.subr.bf16.mxu0 0
    %557 = vmatpush1.bf16.msra.mxu0 %v221
    %558 = vmatprep.subr.bf16.mxu0 0
    %559 = vmatpush1.bf16.msra.mxu0 %v222
    %560 = vmatprep.subr.bf16.mxu0 0
    %561 = vmatpush1.bf16.msra.mxu0 0
    %562 = vmatprep.subr.bf16.mxu0 0
    %563 = vmatpush1.bf16.msra.mxu0 0
    %564 = vmatprep.subr.bf16.mxu0 0
    %565 = vmatpush1.bf16.msra.mxu0 0
    %566 = vmatprep.subr.bf16.mxu0 0
    %567 = vmatpush1.bf16.msra.mxu0 0
    %568 = vmatprep.subr.bf16.mxu0 0
    %569 = vmatpush1.bf16.msra.mxu0 0
    %570 = vmatprep.subr.bf16.mxu0 0
    %571 = vmatpush1.bf16.msra.mxu0 0
    %572 = vmatprep.subr.bf16.mxu0 0
    %573 = vmatpush1.bf16.msra.mxu0 0
    %574 = vmatprep.subr.bf16.mxu0 0
    %575 = vmatpush1.bf16.msra.mxu0 0
    %576 = vmatprep.subr.bf16.mxu0 0
    %577 = vmatpush1.bf16.msra.mxu0 0
    %578 = vmatprep.subr.bf16.mxu0 0
    %579 = vmatpush1.bf16.msra.mxu0 0
    %580 = vmatprep.subr.bf16.mxu0 0
    %581 = vmatpush1.bf16.msra.mxu0 0
    %582 = vmatprep.subr.bf16.mxu0 0
    %583 = vmatpush1.bf16.msra.mxu0 0
    %584 = vmatprep.subr.bf16.mxu0 0
    %585 = vmatpush1.bf16.msra.mxu0 0
    %586 = vmatprep.subr.bf16.mxu0 0
    %587 = vmatpush1.bf16.msra.mxu0 0
    %588 = vmatprep.mubr.bf16.mxu0 0
    %589 = vmatmul.mubr.bf16.gmra.mrb[0].mxu0 %v554
    %v590 = vpop.f32.mrb[0].mxu0
    %v591 = vadd.f32 0.0, %v590
    %v592 = vpop.f32.mrb[0].mxu0
    %v593 = vpop.f32.mrb[0].mxu0
    %v594 = vpop.f32.mrb[0].mxu0
    %595 = vdwg.mxu0
    %v596 = vadd.f32 %v548, %v591
    %v597 = vmul.f32 %v596, %v210
    %v598 = vxor.u32 %v597, 2147483648
    %v599 = vmul.f32 %v598, 1.442695
    %v600 = vpow.pop %v599
    %v601 = vadd.f32 %v600, 1.0
    %v602 = vrcp.pop %v601
    %v603 = vmul.f32 1.0, %v602
    %v604 = vmul.f32 %v603, %v210
    %v605 = vadd.f32 %v604, %v211
    %v606 = vmul.f32 %v605, %v534
    %608 = vrot.lane.b32.xlu0 %v605, 64
    %v609 = vpop.permute.xlu0 %608
    %v611 = vmul.f32 %v605, %v609
    %613 = vrot.lane.b32.xlu0 %v611, 32
    %v614 = vpop.permute.xlu0 %613
    %v616 = vadd.f32 %v606, %v614
    %v617 = vtanh.pop %v616
    %619 = vrot.lane.b32.xlu0 %v617, 64
    %v620 = vpop.permute.xlu0 %619
    %v622 = vmul.f32 %v605, %v620
    %624 = vrot.lane.b32.xlu0 %v622, 32
    %v625 = vpop.permute.xlu0 %624
    %s627 = scalar_lea.vmem [#allocation3], 32
    %628 = vst.msk [vmem:[%s627] sm:$0xff] %vm225, %v625
    %s629 = scalar_lea.vmem [#allocation2], 40
    %v630 = vld [vmem:[%s629] sm:$0xff]
    %v631 = vpack.c.bf16 %v622, %v622
    %633 = vrot.lane.b32.xlu0 %v631, 32
    %v634 = vpop.permute.xlu0 %633
    %v636 = vsel %vm225, %v634, 0
    %638 = vmatprep.subr.bf16.mxu0 0
    %639 = vmatpush1.bf16.msra.mxu0 %v221
    %640 = vmatprep.subr.bf16.mxu0 0
    %641 = vmatpush1.bf16.msra.mxu0 %v222
    %642 = vmatprep.subr.bf16.mxu0 0
    %643 = vmatpush1.bf16.msra.mxu0 0
    %644 = vmatprep.subr.bf16.mxu0 0
    %645 = vmatpush1.bf16.msra.mxu0 0
    %646 = vmatprep.subr.bf16.mxu0 0
    %647 = vmatpush1.bf16.msra.mxu0 0
    %648 = vmatprep.subr.bf16.mxu0 0
    %649 = vmatpush1.bf16.msra.mxu0 0
    %650 = vmatprep.subr.bf16.mxu0 0
    %651 = vmatpush1.bf16.msra.mxu0 0
    %652 = vmatprep.subr.bf16.mxu0 0
    %653 = vmatpush1.bf16.msra.mxu0 0
    %654 = vmatprep.subr.bf16.mxu0 0
    %655 = vmatpush1.bf16.msra.mxu0 0
    %656 = vmatprep.subr.bf16.mxu0 0
    %657 = vmatpush1.bf16.msra.mxu0 0
    %658 = vmatprep.subr.bf16.mxu0 0
    %659 = vmatpush1.bf16.msra.mxu0 0
    %660 = vmatprep.subr.bf16.mxu0 0
    %661 = vmatpush1.bf16.msra.mxu0 0
    %662 = vmatprep.subr.bf16.mxu0 0
    %663 = vmatpush1.bf16.msra.mxu0 0
    %664 = vmatprep.subr.bf16.mxu0 0
    %665 = vmatpush1.bf16.msra.mxu0 0
    %666 = vmatprep.subr.bf16.mxu0 0
    %667 = vmatpush1.bf16.msra.mxu0 0
    %668 = vmatprep.subr.bf16.mxu0 0
    %669 = vmatpush1.bf16.msra.mxu0 0
    %670 = vmatprep.mubr.bf16.mxu0 0
    %671 = vmatmul.mubr.bf16.gmra.mrb[0].mxu0 %v636
    %v672 = vpop.f32.mrb[0].mxu0
    %v673 = vadd.f32 0.0, %v672
    %v674 = vpop.f32.mrb[0].mxu0
    %v675 = vpop.f32.mrb[0].mxu0
    %v676 = vpop.f32.mrb[0].mxu0
    %677 = vdwg.mxu0
    %v678 = vadd.f32 %v630, %v673
    %v679 = vmul.f32 %v678, %v210
    %v680 = vxor.u32 %v679, 2147483648
    %v681 = vmul.f32 %v680, 1.442695
    %v682 = vpow.pop %v681
    %v683 = vadd.f32 %v682, 1.0
    %v684 = vrcp.pop %v683
    %v685 = vmul.f32 1.0, %v684
    %v686 = vmul.f32 %v685, %v210
    %v687 = vadd.f32 %v686, %v211
    %v688 = vmul.f32 %v687, %v616
    %690 = vrot.lane.b32.xlu0 %v687, 64
    %v691 = vpop.permute.xlu0 %690
    %v693 = vmul.f32 %v687, %v691
    %695 = vrot.lane.b32.xlu0 %v693, 32
    %v696 = vpop.permute.xlu0 %695
    %v698 = vadd.f32 %v688, %v696
    %v699 = vtanh.pop %v698
    %701 = vrot.lane.b32.xlu0 %v699, 64
    %v702 = vpop.permute.xlu0 %701
    %v704 = vmul.f32 %v687, %v702
    %706 = vrot.lane.b32.xlu0 %v704, 32
    %v707 = vpop.permute.xlu0 %706
    %s709 = scalar_lea.vmem [#allocation3], 40
    %710 = vst.msk [vmem:[%s709] sm:$0xff] %vm225, %v707
    %s711 = scalar_lea.vmem [#allocation2], 48
    %v712 = vld [vmem:[%s711] sm:$0xff]
    %v713 = vpack.c.bf16 %v704, %v704
    %715 = vrot.lane.b32.xlu0 %v713, 32
    %v716 = vpop.permute.xlu0 %715
    %v718 = vsel %vm225, %v716, 0
    %720 = vmatprep.subr.bf16.mxu0 0
    %721 = vmatpush1.bf16.msra.mxu0 %v221
    %722 = vmatprep.subr.bf16.mxu0 0
    %723 = vmatpush1.bf16.msra.mxu0 %v222
    %724 = vmatprep.subr.bf16.mxu0 0
    %725 = vmatpush1.bf16.msra.mxu0 0
    %726 = vmatprep.subr.bf16.mxu0 0
    %727 = vmatpush1.bf16.msra.mxu0 0
    %728 = vmatprep.subr.bf16.mxu0 0
    %729 = vmatpush1.bf16.msra.mxu0 0
    %730 = vmatprep.subr.bf16.mxu0 0
    %731 = vmatpush1.bf16.msra.mxu0 0
    %732 = vmatprep.subr.bf16.mxu0 0
    %733 = vmatpush1.bf16.msra.mxu0 0
    %734 = vmatprep.subr.bf16.mxu0 0
    %735 = vmatpush1.bf16.msra.mxu0 0
    %736 = vmatprep.subr.bf16.mxu0 0
    %737 = vmatpush1.bf16.msra.mxu0 0
    %738 = vmatprep.subr.bf16.mxu0 0
    %739 = vmatpush1.bf16.msra.mxu0 0
    %740 = vmatprep.subr.bf16.mxu0 0
    %741 = vmatpush1.bf16.msra.mxu0 0
    %742 = vmatprep.subr.bf16.mxu0 0
    %743 = vmatpush1.bf16.msra.mxu0 0
    %744 = vmatprep.subr.bf16.mxu0 0
    %745 = vmatpush1.bf16.msra.mxu0 0
    %746 = vmatprep.subr.bf16.mxu0 0
    %747 = vmatpush1.bf16.msra.mxu0 0
    %748 = vmatprep.subr.bf16.mxu0 0
    %749 = vmatpush1.bf16.msra.mxu0 0
    %750 = vmatprep.subr.bf16.mxu0 0
    %751 = vmatpush1.bf16.msra.mxu0 0
    %752 = vmatprep.mubr.bf16.mxu0 0
    %753 = vmatmul.mubr.bf16.gmra.mrb[0].mxu0 %v718
    %v754 = vpop.f32.mrb[0].mxu0
    %v755 = vadd.f32 0.0, %v754
    %v756 = vpop.f32.mrb[0].mxu0
    %v757 = vpop.f32.mrb[0].mxu0
    %v758 = vpop.f32.mrb[0].mxu0
    %759 = vdwg.mxu0
    %v760 = vadd.f32 %v712, %v755
    %v761 = vmul.f32 %v760, %v210
    %v762 = vxor.u32 %v761, 2147483648
    %v763 = vmul.f32 %v762, 1.442695
    %v764 = vpow.pop %v763
    %v765 = vadd.f32 %v764, 1.0
    %v766 = vrcp.pop %v765
    %v767 = vmul.f32 1.0, %v766
    %v768 = vmul.f32 %v767, %v210
    %v769 = vadd.f32 %v768, %v211
    %v770 = vmul.f32 %v769, %v698
    %772 = vrot.lane.b32.xlu0 %v769, 64
    %v773 = vpop.permute.xlu0 %772
    %v775 = vmul.f32 %v769, %v773
    %777 = vrot.lane.b32.xlu0 %v775, 32
    %v778 = vpop.permute.xlu0 %777
    %v780 = vadd.f32 %v770, %v778
    %v781 = vtanh.pop %v780
    %783 = vrot.lane.b32.xlu0 %v781, 64
    %v784 = vpop.permute.xlu0 %783
    %v786 = vmul.f32 %v769, %v784
    %788 = vrot.lane.b32.xlu0 %v786, 32
    %v789 = vpop.permute.xlu0 %788
    %s791 = scalar_lea.vmem [#allocation3], 48
    %792 = vst.msk [vmem:[%s791] sm:$0xff] %vm225, %v789
    %s793 = scalar_lea.vmem [#allocation2], 56
    %v794 = vld [vmem:[%s793] sm:$0xff]
    %v795 = vpack.c.bf16 %v786, %v786
    %797 = vrot.lane.b32.xlu0 %v795, 32
    %v798 = vpop.permute.xlu0 %797
    %v800 = vsel %vm225, %v798, 0
    %802 = vmatprep.subr.bf16.mxu0 0
    %803 = vmatpush1.bf16.msra.mxu0 %v221
    %804 = vmatprep.subr.bf16.mxu0 0
    %805 = vmatpush1.bf16.msra.mxu0 %v222
    %806 = vmatprep.subr.bf16.mxu0 0
    %807 = vmatpush1.bf16.msra.mxu0 0
    %808 = vmatprep.subr.bf16.mxu0 0
    %809 = vmatpush1.bf16.msra.mxu0 0
    %810 = vmatprep.subr.bf16.mxu0 0
    %811 = vmatpush1.bf16.msra.mxu0 0
    %812 = vmatprep.subr.bf16.mxu0 0
    %813 = vmatpush1.bf16.msra.mxu0 0
    %814 = vmatprep.subr.bf16.mxu0 0
    %815 = vmatpush1.bf16.msra.mxu0 0
    %816 = vmatprep.subr.bf16.mxu0 0
    %817 = vmatpush1.bf16.msra.mxu0 0
    %818 = vmatprep.subr.bf16.mxu0 0
    %819 = vmatpush1.bf16.msra.mxu0 0
    %820 = vmatprep.subr.bf16.mxu0 0
    %821 = vmatpush1.bf16.msra.mxu0 0
    %822 = vmatprep.subr.bf16.mxu0 0
    %823 = vmatpush1.bf16.msra.mxu0 0
    %824 = vmatprep.subr.bf16.mxu0 0
    %825 = vmatpush1.bf16.msra.mxu0 0
    %826 = vmatprep.subr.bf16.mxu0 0
    %827 = vmatpush1.bf16.msra.mxu0 0
    %828 = vmatprep.subr.bf16.mxu0 0
    %829 = vmatpush1.bf16.msra.mxu0 0
    %830 = vmatprep.subr.bf16.mxu0 0
    %831 = vmatpush1.bf16.msra.mxu0 0
    %832 = vmatprep.subr.bf16.mxu0 0
    %833 = vmatpush1.bf16.msra.mxu0 0
    %834 = vmatprep.mubr.bf16.mxu0 0
    %835 = vmatmul.mubr.bf16.gmra.mrb[0].mxu0 %v800
    %v836 = vpop.f32.mrb[0].mxu0
    %v837 = vadd.f32 0.0, %v836
    %v838 = vpop.f32.mrb[0].mxu0
    %v839 = vpop.f32.mrb[0].mxu0
    %v840 = vpop.f32.mrb[0].mxu0
    %841 = vdwg.mxu0
    %v842 = vadd.f32 %v794, %v837
    %v843 = vmul.f32 %v842, %v210
    %v844 = vxor.u32 %v843, 2147483648
    %v845 = vmul.f32 %v844, 1.442695
    %v846 = vpow.pop %v845
    %v847 = vadd.f32 %v846, 1.0
    %v848 = vrcp.pop %v847
    %v849 = vmul.f32 1.0, %v848
    %v850 = vmul.f32 %v849, %v210
    %v851 = vadd.f32 %v850, %v211
    %v852 = vmul.f32 %v851, %v780
    %854 = vrot.lane.b32.xlu0 %v851, 64
    %v855 = vpop.permute.xlu0 %854
    %v857 = vmul.f32 %v851, %v855
    %859 = vrot.lane.b32.xlu0 %v857, 32
    %v860 = vpop.permute.xlu0 %859
    %v862 = vadd.f32 %v852, %v860
    %v863 = vtanh.pop %v862
    %865 = vrot.lane.b32.xlu0 %v863, 64
    %v866 = vpop.permute.xlu0 %865
    %v868 = vmul.f32 %v851, %v866
    %870 = vrot.lane.b32.xlu0 %v868, 32
    %v871 = vpop.permute.xlu0 %870
    %s873 = scalar_lea.vmem [#allocation3], 56
    %874 = vst.msk [vmem:[%s873] sm:$0xff] %vm225, %v871
    %v875 = vld [vmem:[#allocation3] sm:$0xff]
    %v876 = vld [vmem:[#allocation3 + $0x8] sm:$0xff]
    %v877 = vld [vmem:[#allocation3 + $0x10] sm:$0xff]
    %v878 = vld [vmem:[#allocation3 + $0x18] sm:$0xff]
    %v879 = vld [vmem:[#allocation3 + $0x20] sm:$0xff]
    %v880 = vld [vmem:[#allocation3 + $0x28] sm:$0xff]
    %v881 = vld [vmem:[#allocation3 + $0x30] sm:$0xff]
    %v882 = vld [vmem:[#allocation3 + $0x38] sm:$0xff]
    %v883 = vpack.c.bf16 %v876, %v875
    %v884 = vpack.c.bf16 %v878, %v877
    %v885 = vpack.c.bf16 %v880, %v879
    %v886 = vpack.c.bf16 %v882, %v881
    %v887 = vld [vmem:[%s4] sm:$0xf]
    %v888 = vld [vmem:[%s4 + $0x4] sm:$0xf]
    %v889 = vld [vmem:[%s4 + $0x8] sm:$0xf]
    %v890 = vld [vmem:[%s4 + $0xc] sm:$0xf]
    %v891 = vld [vmem:[%s6] sm:$0x1]
    %v893 = vlaneseq
    %v894 = vshrl.u32 %v893, 7
    %v895 = vsub.s32 0, %v894
    %v896 = vrot.slane %v891, %v895
    %v902 = vunpack.c.l.b16 %v887
    %v903 = vunpack.c.l.b16 %v888
    %v904 = vunpack.c.l.b16 %v889
    %v905 = vunpack.c.l.b16 %v890
    %v906 = vpack.c.b16 %v903, %v902
    %v907 = vpack.c.b16 %v905, %v904
    %v911 = vsel %vm225, %v883, 0
    %v914 = vsel %vm225, %v884, 0
    %v917 = vsel %vm225, %v885, 0
    %v920 = vsel %vm225, %v886, 0
    %922 = vmatprep.subr.bf16.mxu0 0
    %923 = vmatpush1.bf16.msra.mxu0 %v906
    %924 = vmatprep.subr.bf16.mxu0 0
    %925 = vmatpush1.bf16.msra.mxu0 %v907
    %926 = vmatprep.subr.bf16.mxu0 0
    %927 = vmatpush1.bf16.msra.mxu0 0
    %928 = vmatprep.subr.bf16.mxu0 0
    %929 = vmatpush1.bf16.msra.mxu0 0
    %930 = vmatprep.subr.bf16.mxu0 0
    %931 = vmatpush1.bf16.msra.mxu0 0
    %932 = vmatprep.subr.bf16.mxu0 0
    %933 = vmatpush1.bf16.msra.mxu0 0
    %934 = vmatprep.subr.bf16.mxu0 0
    %935 = vmatpush1.bf16.msra.mxu0 0
    %936 = vmatprep.subr.bf16.mxu0 0
    %937 = vmatpush1.bf16.msra.mxu0 0
    %938 = vmatprep.subr.bf16.mxu0 0
    %939 = vmatpush1.bf16.msra.mxu0 0
    %940 = vmatprep.subr.bf16.mxu0 0
    %941 = vmatpush1.bf16.msra.mxu0 0
    %942 = vmatprep.subr.bf16.mxu0 0
    %943 = vmatpush1.bf16.msra.mxu0 0
    %944 = vmatprep.subr.bf16.mxu0 0
    %945 = vmatpush1.bf16.msra.mxu0 0
    %946 = vmatprep.subr.bf16.mxu0 0
    %947 = vmatpush1.bf16.msra.mxu0 0
    %948 = vmatprep.subr.bf16.mxu0 0
    %949 = vmatpush1.bf16.msra.mxu0 0
    %950 = vmatprep.subr.bf16.mxu0 0
    %951 = vmatpush1.bf16.msra.mxu0 0
    %952 = vmatprep.subr.bf16.mxu0 0
    %953 = vmatpush1.bf16.msra.mxu0 0
    %954 = vmatprep.mubr.bf16.mxu0 0
    %955 = vmatmul.mubr.bf16.gmra.mrb[0].mxu0 %v911
    %v956 = vpop.f32.mrb[0].mxu0
    %v957 = vadd.f32 %v896, %v956
    %v958 = vpop.f32.mrb[0].mxu0
    %v959 = vpop.f32.mrb[0].mxu0
    %v960 = vadd.f32 %v896, %v959
    %v961 = vpop.f32.mrb[0].mxu0
    %962 = vmatprep.mubr.bf16.mxu0 0
    %963 = vmatmul.mubr.bf16.gmra.mrb[0].mxu0 %v914
    %v964 = vpop.f32.mrb[0].mxu0
    %v965 = vadd.f32 %v896, %v964
    %v966 = vpop.f32.mrb[0].mxu0
    %v967 = vpop.f32.mrb[0].mxu0
    %v968 = vadd.f32 %v896, %v967
    %v969 = vpop.f32.mrb[0].mxu0
    %970 = vmatprep.mubr.bf16.mxu0 0
    %971 = vmatmul.mubr.bf16.gmra.mrb[0].mxu0 %v917
    %v972 = vpop.f32.mrb[0].mxu0
    %v973 = vadd.f32 %v896, %v972
    %v974 = vpop.f32.mrb[0].mxu0
    %v975 = vpop.f32.mrb[0].mxu0
    %v976 = vadd.f32 %v896, %v975
    %v977 = vpop.f32.mrb[0].mxu0
    %978 = vmatprep.mubr.bf16.mxu0 0
    %979 = vmatmul.mubr.bf16.gmra.mrb[0].mxu0 %v920
    %v980 = vpop.f32.mrb[0].mxu0
    %v981 = vadd.f32 %v896, %v980
    %v982 = vpop.f32.mrb[0].mxu0
    %v983 = vpop.f32.mrb[0].mxu0
    %v984 = vadd.f32 %v896, %v983
    %v985 = vpop.f32.mrb[0].mxu0
    %986 = vdwg.mxu0
    %987 = vst.msk [vmem:[#allocation4] sm:$0xff] %vm225, %v957
    %988 = vst.msk [vmem:[#allocation4 + $0x8] sm:$0xff] %vm225, %v960
    %989 = vst.msk [vmem:[#allocation4 + $0x10] sm:$0xff] %vm225, %v965
    %990 = vst.msk [vmem:[#allocation4 + $0x18] sm:$0xff] %vm225, %v968
    %991 = vst.msk [vmem:[#allocation4 + $0x20] sm:$0xff] %vm225, %v973
    %992 = vst.msk [vmem:[#allocation4 + $0x28] sm:$0xff] %vm225, %v976
    %993 = vst.msk [vmem:[#allocation4 + $0x30] sm:$0xff] %vm225, %v981
    %994 = vst.msk [vmem:[#allocation4 + $0x38] sm:$0xff] %vm225, %v984
    %v995 = vld [vmem:[#allocation11] sm:$0xf]
    %v996 = vld [vmem:[#allocation11 + $0x4] sm:$0xf]
    %v997 = vld [vmem:[#allocation11 + $0x8] sm:$0xf]
    %v998 = vld [vmem:[#allocation11 + $0xc] sm:$0xf]
    %v999 = vld [vmem:[#allocation4] sm:$0xff]
    %v1004 = vunpack.c.l.b16 %v995
    %v1005 = vunpack.c.l.b16 %v996
    %v1006 = vunpack.c.l.b16 %v997
    %v1007 = vunpack.c.l.b16 %v998
    %v1008 = vpack.c.b16 %v1005, %v1004
    %v1009 = vpack.c.b16 %v1007, %v1006
    %1012 = vmatprep.subr.bf16.mxu0 0
    %1013 = vmatpush1.bf16.msra.mxu0 %v1008
    %1014 = vmatprep.subr.bf16.mxu0 0
    %1015 = vmatpush1.bf16.msra.mxu0 %v1009
    %1016 = vmatprep.subr.bf16.mxu0 0
    %1017 = vmatpush1.bf16.msra.mxu0 0
    %1018 = vmatprep.subr.bf16.mxu0 0
    %1019 = vmatpush1.bf16.msra.mxu0 0
    %1020 = vmatprep.subr.bf16.mxu0 0
    %1021 = vmatpush1.bf16.msra.mxu0 0
    %1022 = vmatprep.subr.bf16.mxu0 0
    %1023 = vmatpush1.bf16.msra.mxu0 0
    %1024 = vmatprep.subr.bf16.mxu0 0
    %1025 = vmatpush1.bf16.msra.mxu0 0
    %1026 = vmatprep.subr.bf16.mxu0 0
    %1027 = vmatpush1.bf16.msra.mxu0 0
    %1028 = vmatprep.subr.bf16.mxu0 0
    %1029 = vmatpush1.bf16.msra.mxu0 0
    %1030 = vmatprep.subr.bf16.mxu0 0
    %1031 = vmatpush1.bf16.msra.mxu0 0
    %1032 = vmatprep.subr.bf16.mxu0 0
    %1033 = vmatpush1.bf16.msra.mxu0 0
    %1034 = vmatprep.subr.bf16.mxu0 0
    %1035 = vmatpush1.bf16.msra.mxu0 0
    %1036 = vmatprep.subr.bf16.mxu0 0
    %1037 = vmatpush1.bf16.msra.mxu0 0
    %1038 = vmatprep.subr.bf16.mxu0 0
    %1039 = vmatpush1.bf16.msra.mxu0 0
    %1040 = vmatprep.subr.bf16.mxu0 0
    %1041 = vmatpush1.bf16.msra.mxu0 0
    %1042 = vmatprep.subr.bf16.mxu0 0
    %1043 = vmatpush1.bf16.msra.mxu0 0
    %1044 = vmatprep.mubr.bf16.mxu0 0
    %1045 = vmatmul.mubr.bf16.gmra.mrb[0].mxu0 %v227
    %v1046 = vpop.f32.mrb[0].mxu0
    %v1047 = vadd.f32 0.0, %v1046
    %v1048 = vpop.f32.mrb[0].mxu0
    %v1049 = vpop.f32.mrb[0].mxu0
    %v1050 = vpop.f32.mrb[0].mxu0
    %1051 = vdwg.mxu0
    %v1052 = vadd.f32 %v999, %v1047
    %v1053 = vtanh.pop %v1052
    %s1054 = scalar_lea.vmem [#allocation4], 8
    %v1055 = vld [vmem:[%s1054] sm:$0xff]
    %v1056 = vpack.c.bf16 %v1053, %v1053
    %v1058 = vsel %vm225, %v1056, 0
    %1060 = vmatprep.subr.bf16.mxu0 0
    %1061 = vmatpush1.bf16.msra.mxu0 %v1008
    %1062 = vmatprep.subr.bf16.mxu0 0
    %1063 = vmatpush1.bf16.msra.mxu0 %v1009
    %1064 = vmatprep.subr.bf16.mxu0 0
    %1065 = vmatpush1.bf16.msra.mxu0 0
    %1066 = vmatprep.subr.bf16.mxu0 0
    %1067 = vmatpush1.bf16.msra.mxu0 0
    %1068 = vmatprep.subr.bf16.mxu0 0
    %1069 = vmatpush1.bf16.msra.mxu0 0
    %1070 = vmatprep.subr.bf16.mxu0 0
    %1071 = vmatpush1.bf16.msra.mxu0 0
    %1072 = vmatprep.subr.bf16.mxu0 0
    %1073 = vmatpush1.bf16.msra.mxu0 0
    %1074 = vmatprep.subr.bf16.mxu0 0
    %1075 = vmatpush1.bf16.msra.mxu0 0
    %1076 = vmatprep.subr.bf16.mxu0 0
    %1077 = vmatpush1.bf16.msra.mxu0 0
    %1078 = vmatprep.subr.bf16.mxu0 0
    %1079 = vmatpush1.bf16.msra.mxu0 0
    %1080 = vmatprep.subr.bf16.mxu0 0
    %1081 = vmatpush1.bf16.msra.mxu0 0
    %1082 = vmatprep.subr.bf16.mxu0 0
    %1083 = vmatpush1.bf16.msra.mxu0 0
    %1084 = vmatprep.subr.bf16.mxu0 0
    %1085 = vmatpush1.bf16.msra.mxu0 0
    %1086 = vmatprep.subr.bf16.mxu0 0
    %1087 = vmatpush1.bf16.msra.mxu0 0
    %1088 = vmatprep.subr.bf16.mxu0 0
    %1089 = vmatpush1.bf16.msra.mxu0 0
    %1090 = vmatprep.subr.bf16.mxu0 0
    %1091 = vmatpush1.bf16.msra.mxu0 0
    %1092 = vmatprep.mubr.bf16.mxu0 0
    %1093 = vmatmul.mubr.bf16.gmra.mrb[0].mxu0 %v1058
    %v1094 = vpop.f32.mrb[0].mxu0
    %v1095 = vadd.f32 0.0, %v1094
    %v1096 = vpop.f32.mrb[0].mxu0
    %v1097 = vpop.f32.mrb[0].mxu0
    %v1098 = vpop.f32.mrb[0].mxu0
    %1099 = vdwg.mxu0
    %v1100 = vadd.f32 %v1055, %v1095
    %v1101 = vtanh.pop %v1100
    %s1102 = scalar_lea.vmem [#allocation4], 16
    %v1103 = vld [vmem:[%s1102] sm:$0xff]
    %v1104 = vpack.c.bf16 %v1101, %v1101
    %v1106 = vsel %vm225, %v1104, 0
    %1108 = vmatprep.subr.bf16.mxu0 0
    %1109 = vmatpush1.bf16.msra.mxu0 %v1008
    %1110 = vmatprep.subr.bf16.mxu0 0
    %1111 = vmatpush1.bf16.msra.mxu0 %v1009
    %1112 = vmatprep.subr.bf16.mxu0 0
    %1113 = vmatpush1.bf16.msra.mxu0 0
    %1114 = vmatprep.subr.bf16.mxu0 0
    %1115 = vmatpush1.bf16.msra.mxu0 0
    %1116 = vmatprep.subr.bf16.mxu0 0
    %1117 = vmatpush1.bf16.msra.mxu0 0
    %1118 = vmatprep.subr.bf16.mxu0 0
    %1119 = vmatpush1.bf16.msra.mxu0 0
    %1120 = vmatprep.subr.bf16.mxu0 0
    %1121 = vmatpush1.bf16.msra.mxu0 0
    %1122 = vmatprep.subr.bf16.mxu0 0
    %1123 = vmatpush1.bf16.msra.mxu0 0
    %1124 = vmatprep.subr.bf16.mxu0 0
    %1125 = vmatpush1.bf16.msra.mxu0 0
    %1126 = vmatprep.subr.bf16.mxu0 0
    %1127 = vmatpush1.bf16.msra.mxu0 0
    %1128 = vmatprep.subr.bf16.mxu0 0
    %1129 = vmatpush1.bf16.msra.mxu0 0
    %1130 = vmatprep.subr.bf16.mxu0 0
    %1131 = vmatpush1.bf16.msra.mxu0 0
    %1132 = vmatprep.subr.bf16.mxu0 0
    %1133 = vmatpush1.bf16.msra.mxu0 0
    %1134 = vmatprep.subr.bf16.mxu0 0
    %1135 = vmatpush1.bf16.msra.mxu0 0
    %1136 = vmatprep.subr.bf16.mxu0 0
    %1137 = vmatpush1.bf16.msra.mxu0 0
    %1138 = vmatprep.subr.bf16.mxu0 0
    %1139 = vmatpush1.bf16.msra.mxu0 0
    %1140 = vmatprep.mubr.bf16.mxu0 0
    %1141 = vmatmul.mubr.bf16.gmra.mrb[0].mxu0 %v1106
    %v1142 = vpop.f32.mrb[0].mxu0
    %v1143 = vadd.f32 0.0, %v1142
    %v1144 = vpop.f32.mrb[0].mxu0
    %v1145 = vpop.f32.mrb[0].mxu0
    %v1146 = vpop.f32.mrb[0].mxu0
    %1147 = vdwg.mxu0
    %v1148 = vadd.f32 %v1103, %v1143
    %v1149 = vtanh.pop %v1148
    %s1150 = scalar_lea.vmem [#allocation4], 24
    %v1151 = vld [vmem:[%s1150] sm:$0xff]
    %v1152 = vpack.c.bf16 %v1149, %v1149
    %v1154 = vsel %vm225, %v1152, 0
    %1156 = vmatprep.subr.bf16.mxu0 0
    %1157 = vmatpush1.bf16.msra.mxu0 %v1008
    %1158 = vmatprep.subr.bf16.mxu0 0
    %1159 = vmatpush1.bf16.msra.mxu0 %v1009
    %1160 = vmatprep.subr.bf16.mxu0 0
    %1161 = vmatpush1.bf16.msra.mxu0 0
    %1162 = vmatprep.subr.bf16.mxu0 0
    %1163 = vmatpush1.bf16.msra.mxu0 0
    %1164 = vmatprep.subr.bf16.mxu0 0
    %1165 = vmatpush1.bf16.msra.mxu0 0
    %1166 = vmatprep.subr.bf16.mxu0 0
    %1167 = vmatpush1.bf16.msra.mxu0 0
    %1168 = vmatprep.subr.bf16.mxu0 0
    %1169 = vmatpush1.bf16.msra.mxu0 0
    %1170 = vmatprep.subr.bf16.mxu0 0
    %1171 = vmatpush1.bf16.msra.mxu0 0
    %1172 = vmatprep.subr.bf16.mxu0 0
    %1173 = vmatpush1.bf16.msra.mxu0 0
    %1174 = vmatprep.subr.bf16.mxu0 0
    %1175 = vmatpush1.bf16.msra.mxu0 0
    %1176 = vmatprep.subr.bf16.mxu0 0
    %1177 = vmatpush1.bf16.msra.mxu0 0
    %1178 = vmatprep.subr.bf16.mxu0 0
    %1179 = vmatpush1.bf16.msra.mxu0 0
    %1180 = vmatprep.subr.bf16.mxu0 0
    %1181 = vmatpush1.bf16.msra.mxu0 0
    %1182 = vmatprep.subr.bf16.mxu0 0
    %1183 = vmatpush1.bf16.msra.mxu0 0
    %1184 = vmatprep.subr.bf16.mxu0 0
    %1185 = vmatpush1.bf16.msra.mxu0 0
    %1186 = vmatprep.subr.bf16.mxu0 0
    %1187 = vmatpush1.bf16.msra.mxu0 0
    %1188 = vmatprep.mubr.bf16.mxu0 0
    %1189 = vmatmul.mubr.bf16.gmra.mrb[0].mxu0 %v1154
    %v1190 = vpop.f32.mrb[0].mxu0
    %v1191 = vadd.f32 0.0, %v1190
    %v1192 = vpop.f32.mrb[0].mxu0
    %v1193 = vpop.f32.mrb[0].mxu0
    %v1194 = vpop.f32.mrb[0].mxu0
    %1195 = vdwg.mxu0
    %v1196 = vadd.f32 %v1151, %v1191
    %v1197 = vtanh.pop %v1196
    %s1198 = scalar_lea.vmem [#allocation4], 32
    %v1199 = vld [vmem:[%s1198] sm:$0xff]
    %v1200 = vpack.c.bf16 %v1197, %v1197
    %v1202 = vsel %vm225, %v1200, 0
    %1204 = vmatprep.subr.bf16.mxu0 0
    %1205 = vmatpush1.bf16.msra.mxu0 %v1008
    %1206 = vmatprep.subr.bf16.mxu0 0
    %1207 = vmatpush1.bf16.msra.mxu0 %v1009
    %1208 = vmatprep.subr.bf16.mxu0 0
    %1209 = vmatpush1.bf16.msra.mxu0 0
    %1210 = vmatprep.subr.bf16.mxu0 0
    %1211 = vmatpush1.bf16.msra.mxu0 0
    %1212 = vmatprep.subr.bf16.mxu0 0
    %1213 = vmatpush1.bf16.msra.mxu0 0
    %1214 = vmatprep.subr.bf16.mxu0 0
    %1215 = vmatpush1.bf16.msra.mxu0 0
    %1216 = vmatprep.subr.bf16.mxu0 0
    %1217 = vmatpush1.bf16.msra.mxu0 0
    %1218 = vmatprep.subr.bf16.mxu0 0
    %1219 = vmatpush1.bf16.msra.mxu0 0
    %1220 = vmatprep.subr.bf16.mxu0 0
    %1221 = vmatpush1.bf16.msra.mxu0 0
    %1222 = vmatprep.subr.bf16.mxu0 0
    %1223 = vmatpush1.bf16.msra.mxu0 0
    %1224 = vmatprep.subr.bf16.mxu0 0
    %1225 = vmatpush1.bf16.msra.mxu0 0
    %1226 = vmatprep.subr.bf16.mxu0 0
    %1227 = vmatpush1.bf16.msra.mxu0 0
    %1228 = vmatprep.subr.bf16.mxu0 0
    %1229 = vmatpush1.bf16.msra.mxu0 0
    %1230 = vmatprep.subr.bf16.mxu0 0
    %1231 = vmatpush1.bf16.msra.mxu0 0
    %1232 = vmatprep.subr.bf16.mxu0 0
    %1233 = vmatpush1.bf16.msra.mxu0 0
    %1234 = vmatprep.subr.bf16.mxu0 0
    %1235 = vmatpush1.bf16.msra.mxu0 0
    %1236 = vmatprep.mubr.bf16.mxu0 0
    %1237 = vmatmul.mubr.bf16.gmra.mrb[0].mxu0 %v1202
    %v1238 = vpop.f32.mrb[0].mxu0
    %v1239 = vadd.f32 0.0, %v1238
    %v1240 = vpop.f32.mrb[0].mxu0
    %v1241 = vpop.f32.mrb[0].mxu0
    %v1242 = vpop.f32.mrb[0].mxu0
    %1243 = vdwg.mxu0
    %v1244 = vadd.f32 %v1199, %v1239
    %v1245 = vtanh.pop %v1244
    %s1246 = scalar_lea.vmem [#allocation4], 40
    %v1247 = vld [vmem:[%s1246] sm:$0xff]
    %v1248 = vpack.c.bf16 %v1245, %v1245
    %v1250 = vsel %vm225, %v1248, 0
    %1252 = vmatprep.subr.bf16.mxu0 0
    %1253 = vmatpush1.bf16.msra.mxu0 %v1008
    %1254 = vmatprep.subr.bf16.mxu0 0
    %1255 = vmatpush1.bf16.msra.mxu0 %v1009
    %1256 = vmatprep.subr.bf16.mxu0 0
    %1257 = vmatpush1.bf16.msra.mxu0 0
    %1258 = vmatprep.subr.bf16.mxu0 0
    %1259 = vmatpush1.bf16.msra.mxu0 0
    %1260 = vmatprep.subr.bf16.mxu0 0
    %1261 = vmatpush1.bf16.msra.mxu0 0
    %1262 = vmatprep.subr.bf16.mxu0 0
    %1263 = vmatpush1.bf16.msra.mxu0 0
    %1264 = vmatprep.subr.bf16.mxu0 0
    %1265 = vmatpush1.bf16.msra.mxu0 0
    %1266 = vmatprep.subr.bf16.mxu0 0
    %1267 = vmatpush1.bf16.msra.mxu0 0
    %1268 = vmatprep.subr.bf16.mxu0 0
    %1269 = vmatpush1.bf16.msra.mxu0 0
    %1270 = vmatprep.subr.bf16.mxu0 0
    %1271 = vmatpush1.bf16.msra.mxu0 0
    %1272 = vmatprep.subr.bf16.mxu0 0
    %1273 = vmatpush1.bf16.msra.mxu0 0
    %1274 = vmatprep.subr.bf16.mxu0 0
    %1275 = vmatpush1.bf16.msra.mxu0 0
    %1276 = vmatprep.subr.bf16.mxu0 0
    %1277 = vmatpush1.bf16.msra.mxu0 0
    %1278 = vmatprep.subr.bf16.mxu0 0
    %1279 = vmatpush1.bf16.msra.mxu0 0
    %1280 = vmatprep.subr.bf16.mxu0 0
    %1281 = vmatpush1.bf16.msra.mxu0 0
    %1282 = vmatprep.subr.bf16.mxu0 0
    %1283 = vmatpush1.bf16.msra.mxu0 0
    %1284 = vmatprep.mubr.bf16.mxu0 0
    %1285 = vmatmul.mubr.bf16.gmra.mrb[0].mxu0 %v1250
    %v1286 = vpop.f32.mrb[0].mxu0
    %v1287 = vadd.f32 0.0, %v1286
    %v1288 = vpop.f32.mrb[0].mxu0
    %v1289 = vpop.f32.mrb[0].mxu0
    %v1290 = vpop.f32.mrb[0].mxu0
    %1291 = vdwg.mxu0
    %v1292 = vadd.f32 %v1247, %v1287
    %v1293 = vtanh.pop %v1292
    %s1294 = scalar_lea.vmem [#allocation4], 48
    %v1295 = vld [vmem:[%s1294] sm:$0xff]
    %v1296 = vpack.c.bf16 %v1293, %v1293
    %v1298 = vsel %vm225, %v1296, 0
    %1300 = vmatprep.subr.bf16.mxu0 0
    %1301 = vmatpush1.bf16.msra.mxu0 %v1008
    %1302 = vmatprep.subr.bf16.mxu0 0
    %1303 = vmatpush1.bf16.msra.mxu0 %v1009
    %1304 = vmatprep.subr.bf16.mxu0 0
    %1305 = vmatpush1.bf16.msra.mxu0 0
    %1306 = vmatprep.subr.bf16.mxu0 0
    %1307 = vmatpush1.bf16.msra.mxu0 0
    %1308 = vmatprep.subr.bf16.mxu0 0
    %1309 = vmatpush1.bf16.msra.mxu0 0
    %1310 = vmatprep.subr.bf16.mxu0 0
    %1311 = vmatpush1.bf16.msra.mxu0 0
    %1312 = vmatprep.subr.bf16.mxu0 0
    %1313 = vmatpush1.bf16.msra.mxu0 0
    %1314 = vmatprep.subr.bf16.mxu0 0
    %1315 = vmatpush1.bf16.msra.mxu0 0
    %1316 = vmatprep.subr.bf16.mxu0 0
    %1317 = vmatpush1.bf16.msra.mxu0 0
    %1318 = vmatprep.subr.bf16.mxu0 0
    %1319 = vmatpush1.bf16.msra.mxu0 0
    %1320 = vmatprep.subr.bf16.mxu0 0
    %1321 = vmatpush1.bf16.msra.mxu0 0
    %1322 = vmatprep.subr.bf16.mxu0 0
    %1323 = vmatpush1.bf16.msra.mxu0 0
    %1324 = vmatprep.subr.bf16.mxu0 0
    %1325 = vmatpush1.bf16.msra.mxu0 0
    %1326 = vmatprep.subr.bf16.mxu0 0
    %1327 = vmatpush1.bf16.msra.mxu0 0
    %1328 = vmatprep.subr.bf16.mxu0 0
    %1329 = vmatpush1.bf16.msra.mxu0 0
    %1330 = vmatprep.subr.bf16.mxu0 0
    %1331 = vmatpush1.bf16.msra.mxu0 0
    %1332 = vmatprep.mubr.bf16.mxu0 0
    %1333 = vmatmul.mubr.bf16.gmra.mrb[0].mxu0 %v1298
    %v1334 = vpop.f32.mrb[0].mxu0
    %v1335 = vadd.f32 0.0, %v1334
    %v1336 = vpop.f32.mrb[0].mxu0
    %v1337 = vpop.f32.mrb[0].mxu0
    %v1338 = vpop.f32.mrb[0].mxu0
    %1339 = vdwg.mxu0
    %v1340 = vadd.f32 %v1295, %v1335
    %v1341 = vtanh.pop %v1340
    %s1342 = scalar_lea.vmem [#allocation4], 56
    %v1343 = vld [vmem:[%s1342] sm:$0xff]
    %v1344 = vpack.c.bf16 %v1341, %v1341
    %v1346 = vsel %vm225, %v1344, 0
    %1348 = vmatprep.subr.bf16.mxu0 0
    %1349 = vmatpush1.bf16.msra.mxu0 %v1008
    %1350 = vmatprep.subr.bf16.mxu0 0
    %1351 = vmatpush1.bf16.msra.mxu0 %v1009
    %1352 = vmatprep.subr.bf16.mxu0 0
    %1353 = vmatpush1.bf16.msra.mxu0 0
    %1354 = vmatprep.subr.bf16.mxu0 0
    %1355 = vmatpush1.bf16.msra.mxu0 0
    %1356 = vmatprep.subr.bf16.mxu0 0
    %1357 = vmatpush1.bf16.msra.mxu0 0
    %1358 = vmatprep.subr.bf16.mxu0 0
    %1359 = vmatpush1.bf16.msra.mxu0 0
    %1360 = vmatprep.subr.bf16.mxu0 0
    %1361 = vmatpush1.bf16.msra.mxu0 0
    %1362 = vmatprep.subr.bf16.mxu0 0
    %1363 = vmatpush1.bf16.msra.mxu0 0
    %1364 = vmatprep.subr.bf16.mxu0 0
    %1365 = vmatpush1.bf16.msra.mxu0 0
    %1366 = vmatprep.subr.bf16.mxu0 0
    %1367 = vmatpush1.bf16.msra.mxu0 0
    %1368 = vmatprep.subr.bf16.mxu0 0
    %1369 = vmatpush1.bf16.msra.mxu0 0
    %1370 = vmatprep.subr.bf16.mxu0 0
    %1371 = vmatpush1.bf16.msra.mxu0 0
    %1372 = vmatprep.subr.bf16.mxu0 0
    %1373 = vmatpush1.bf16.msra.mxu0 0
    %1374 = vmatprep.subr.bf16.mxu0 0
    %1375 = vmatpush1.bf16.msra.mxu0 0
    %1376 = vmatprep.subr.bf16.mxu0 0
    %1377 = vmatpush1.bf16.msra.mxu0 0
    %1378 = vmatprep.subr.bf16.mxu0 0
    %1379 = vmatpush1.bf16.msra.mxu0 0
    %1380 = vmatprep.mubr.bf16.mxu0 0
    %1381 = vmatmul.mubr.bf16.gmra.mrb[0].mxu0 %v1346
    %v1382 = vpop.f32.mrb[0].mxu0
    %v1383 = vadd.f32 0.0, %v1382
    %v1384 = vpop.f32.mrb[0].mxu0
    %v1385 = vpop.f32.mrb[0].mxu0
    %v1386 = vpop.f32.mrb[0].mxu0
    %1387 = vdwg.mxu0
    %v1388 = vadd.f32 %v1343, %v1383
    %v1389 = vtanh.pop %v1388
    %v1390 = vpack.c.bf16 %v1389, %v1389
    %v1391 = vld [vmem:[%s7] sm:$0xf]
    %v1392 = vld [vmem:[%s7 + $0x4] sm:$0xf]
    %v1393 = vld [vmem:[%s7 + $0x8] sm:$0xf]
    %v1394 = vld [vmem:[%s7 + $0xc] sm:$0xf]
    %v1395 = vld [vmem:[#allocation5] sm:$0x1]
    %v1397 = vlaneseq
    %v1398 = vshrl.u32 %v1397, 7
    %v1399 = vsub.s32 0, %v1398
    %v1400 = vrot.slane %v1395, %v1399
    %v1406 = vunpack.c.l.b16 %v1391
    %v1407 = vunpack.c.l.b16 %v1392
    %v1408 = vunpack.c.l.b16 %v1393
    %v1409 = vunpack.c.l.b16 %v1394
    %v1410 = vpack.c.b16 %v1407, %v1406
    %v1411 = vpack.c.b16 %v1409, %v1408
    %v1415 = vsel %vm225, %v1390, 0
    %1417 = vmatprep.subr.bf16.mxu0 0
    %1418 = vmatpush1.bf16.msra.mxu0 %v1410
    %1419 = vmatprep.subr.bf16.mxu0 0
    %1420 = vmatpush1.bf16.msra.mxu0 %v1411
    %1421 = vmatprep.subr.bf16.mxu0 0
    %1422 = vmatpush1.bf16.msra.mxu0 0
    %1423 = vmatprep.subr.bf16.mxu0 0
    %1424 = vmatpush1.bf16.msra.mxu0 0
    %1425 = vmatprep.subr.bf16.mxu0 0
    %1426 = vmatpush1.bf16.msra.mxu0 0
    %1427 = vmatprep.subr.bf16.mxu0 0
    %1428 = vmatpush1.bf16.msra.mxu0 0
    %1429 = vmatprep.subr.bf16.mxu0 0
    %1430 = vmatpush1.bf16.msra.mxu0 0
    %1431 = vmatprep.subr.bf16.mxu0 0
    %1432 = vmatpush1.bf16.msra.mxu0 0
    %1433 = vmatprep.subr.bf16.mxu0 0
    %1434 = vmatpush1.bf16.msra.mxu0 0
    %1435 = vmatprep.subr.bf16.mxu0 0
    %1436 = vmatpush1.bf16.msra.mxu0 0
    %1437 = vmatprep.subr.bf16.mxu0 0
    %1438 = vmatpush1.bf16.msra.mxu0 0
    %1439 = vmatprep.subr.bf16.mxu0 0
    %1440 = vmatpush1.bf16.msra.mxu0 0
    %1441 = vmatprep.subr.bf16.mxu0 0
    %1442 = vmatpush1.bf16.msra.mxu0 0
    %1443 = vmatprep.subr.bf16.mxu0 0
    %1444 = vmatpush1.bf16.msra.mxu0 0
    %1445 = vmatprep.subr.bf16.mxu0 0
    %1446 = vmatpush1.bf16.msra.mxu0 0
    %1447 = vmatprep.subr.bf16.mxu0 0
    %1448 = vmatpush1.bf16.msra.mxu0 0
    %1449 = vmatprep.mubr.bf16.mxu0 0
    %1450 = vmatmul.mubr.bf16.gmra.mrb[0].mxu0 %v1415
    %v1451 = vpop.f32.mrb[0].mxu0
    %v1452 = vadd.f32 %v1400, %v1451
    %v1453 = vpop.f32.mrb[0].mxu0
    %v1454 = vpop.f32.mrb[0].mxu0
    %v1455 = vpop.f32.mrb[0].mxu0
    %1456 = vdwg.mxu0
    %v1457 = vxor.u32 %v1452, 2147483648
    %v1458 = vmul.f32 %v1457, 1.442695
    %v1459 = vpow.pop %v1458
    %v1460 = vadd.f32 %v1459, 1.0
    %v1461 = vrcp.pop %v1460
    %v1462 = vmul.f32 1.0, %v1461
    %vm1463 = vcmask 7168
    %1464 = vst.msk [vmem:[%s9] sm:$0xff] %vm1463, %v1462
    // Predicated region
    $region54: #{tpu_custom_call.1} parent=1 // pred_check
      _
    $region55: #{tpu_custom_call.1} parent=1 // pred_check_branch
      %1466 = sbr.rel (0) target = $region57
    $region56: #{tpu_custom_call.1} parent=1 // pred_region
      _
    $region57: #{tpu_custom_call.1} parent=1 // pred_fallthru
      _
    // Predicated region
    $region58: #{tpu_custom_call.1} parent=1 // pred_check
      _
    $region59: #{tpu_custom_call.1} parent=1 // pred_check_branch
      %1468 = sbr.rel (0) target = $region61
    $region60: #{tpu_custom_call.1} parent=1 // pred_region
      _
    $region61: #{tpu_custom_call.1} parent=1 // pred_fallthru
      _
    %1469 = vsyncpa [#allocation7], 1
    %1470 = vsyncpa [#allocation9], 1
    %1471 = vsyncpa [#allocation12], 1

</llo_original>
